<compile_context>
chip_gen: v6e
topology: v6e:2x2x1
jax: 0.10.0
libtpu: 0.0.40
codegen_flags: <defaults>
</compile_context>

<pallas_src>
import jax
import jax.numpy as jnp
from jax.experimental import pallas as pl
from jax.experimental.pallas import tpu as pltpu


def _round_up(x, m):
    return (x + m - 1) // m * m


def _padded_bytes(shape, dtype):
    """Approximate VMEM footprint of a 2-D block after (sublane, lane) padding."""
    r, c = shape
    return _round_up(r, 8) * _round_up(c, 128) * jnp.dtype(dtype).itemsize


def make_neumf_kernel(num_mlp_layers):
    """Kernel body for one batch tile of TB rows of the NeuMF forward pass."""

    def kernel(p_ref, q_ref, u_ref, v_ref, w1u_ref, w1v_ref, b1_ref, *rest):
        refs = list(rest)
        out_ref = refs.pop()        # (1, 1, TB)  lane-dense output block
        wp_mlp_ref = refs.pop()     # (1, H_last)
        wp_gmf_ref = refs.pop()     # (1, F)

        f32 = jnp.float32

        # --- GMF branch: elementwise product of MF embeddings (VPU) ---
        gmf = p_ref[...].astype(f32) * q_ref[...].astype(f32)            # (TB, F)

        # --- MLP branch ---
        # The torch-side cat([u, v], dim=1) is folded into the first layer:
        #   cat([u, v]) @ W1 == u @ W1[:F] + v @ W1[F:]
        # so no (B, 2F) concat array ever touches HBM.
        x = (jnp.dot(u_ref[...].astype(f32), w1u_ref[...], preferred_element_type=f32)
             + jnp.dot(v_ref[...].astype(f32), w1v_ref[...], preferred_element_type=f32)
             + b1_ref[...])
        x = jnp.maximum(x, 0.0)                                           # ReLU
        idx = 0
        for _ in range(num_mlp_layers - 1):
            w_ref, b_ref = refs[idx], refs[idx + 1]
            idx += 2
            x = jnp.dot(x, w_ref[...], preferred_element_type=f32) + b_ref[...]
            x = jnp.maximum(x, 0.0)

        # --- prediction layer (width 1, no bias) ---
        # cat([gmf, mlp]) @ Wp == gmf @ Wp[:F] + mlp @ Wp[F:].
        # VPU multiply + XLU lane-reduce (an N=1 MXU matmul would waste 255/256
        # of the MXU and add push/drain latency on every tile).
        out = (jnp.sum(gmf * wp_gmf_ref[...], axis=-1)
               + jnp.sum(x * wp_mlp_ref[...], axis=-1))                   # (TB,)
        # Lane-dense store: the (TB,) result is written as one (1, 1, TB) row so
        # the store uses full 128-lane vst instead of masked single-lane stores.
        out_ref[...] = out.reshape(out_ref.shape).astype(out_ref.dtype)

    return kernel


def neumf_forward(user_id, item_id, params, *, tile_b=4096, act_dtype=jnp.float32):
    """NeuMF forward pass. Embedding gathers stay in JAX; dense hot path in Pallas.

    act_dtype=jnp.bfloat16 halves the gathered-activation HBM traffic (upcast to
    f32 inside the kernel); jnp.float32 keeps bit-level parity with the reference.
    """
    P, Q, U, V = params["P"], params["Q"], params["U"], params["V"]
    mlp_weights = params["mlp_weights"]   # list of (W, b)
    Wp = params["Wp"]                     # (F + H_last, 1)
    assert len(mlp_weights) >= 1

    F = P.shape[1]
    B = user_id.shape[0]

    # Batch tile: multiple of 128 so every activation block and the lane-dense
    # output row are full-lane; capped at tile_b. Pad the *ids* (not the gathered
    # activations) so padding adds no extra HBM round trip.
    tb = min(_round_up(B, 128), _round_up(tile_b, 128))
    b_pad = _round_up(B, tb)
    n_tiles = b_pad // tb
    if b_pad != B:
        user_id = jnp.pad(user_id, (0, b_pad - B))   # id-0 rows, sliced off below
        item_id = jnp.pad(item_id, (0, b_pad - B))

    # Embedding lookups (gathers) — glue, plain JAX; allow_input_fusion below lets
    # XLA fuse these producers into the kernel's input streams where supported.
    p_mf = jnp.take(P, user_id, axis=0).astype(act_dtype)    # (b_pad, F)
    q_mf = jnp.take(Q, item_id, axis=0).astype(act_dtype)    # (b_pad, F)
    u_mlp = jnp.take(U, user_id, axis=0).astype(act_dtype)   # (b_pad, F)
    v_mlp = jnp.take(V, item_id, axis=0).astype(act_dtype)   # (b_pad, F)

    # First MLP layer weight split so the (B, 2F) concat never exists.
    W1, b1 = mlp_weights[0]
    weight_inputs = [W1[:F, :], W1[F:, :], b1.reshape(1, -1)]
    for (W, b) in mlp_weights[1:]:
        weight_inputs.append(W)
        weight_inputs.append(b.reshape(1, -1))
    # Prediction weight as (1, F) / (1, H_last) row vectors for the VPU reduce.
    weight_inputs.append(Wp[:F, 0][None, :])
    weight_inputs.append(Wp[F:, 0][None, :])

    act_inputs = [p_mf, q_mf, u_mlp, v_mlp]
    grid = (n_tiles,)

    # Activations: blocked along the batch axis, streamed + double-buffered.
    act_specs = [pl.BlockSpec((tb, F), lambda i: (i, 0)) for _ in act_inputs]
    # Weights/biases: constant index_map -> resident in VMEM, never re-DMA'd.
    weight_specs = [pl.BlockSpec(w.shape, lambda i: (0, 0)) for w in weight_inputs]
    # Lane-dense output: one (1, 1, tb) row per batch tile.
    out_spec = pl.BlockSpec((1, 1, tb), lambda i: (i, 0, 0))

    # VMEM accounting WITH lane padding: a (tb, F) block occupies
    # tb * round_up(F, 128) * itemsize bytes (~8x raw bytes at F=16).
    act_itemsize = jnp.dtype(act_dtype).itemsize
    act_block_bytes = len(act_inputs) * tb * _round_up(F, 128) * act_itemsize
    out_block_bytes = _padded_bytes((1, tb), jnp.float32)
    weight_bytes = sum(_padded_bytes(w.shape, w.dtype) for w in weight_inputs)
    vmem_estimate = (2 * (act_block_bytes + out_block_bytes)   # double-buffered streams
                     + 2 * weight_bytes                        # resident weights
                     + 2 * act_block_bytes                     # intermediates / spill slack
                     + (8 << 20))
    # Floor above v5e's 16 MiB scoped default; cap well below v7x's 64 MiB physical.
    vmem_limit = int(min(max(vmem_estimate, 32 << 20), 48 << 20))

    kernel = make_neumf_kernel(len(mlp_weights))

    out = pl.pallas_call(
        kernel,
        out_shape=jax.ShapeDtypeStruct((n_tiles, 1, tb), jnp.float32),
        grid=grid,
        in_specs=act_specs + weight_specs,
        out_specs=out_spec,
        compiler_params=pltpu.CompilerParams(
            # Batch tiles are independent -> shard across both TCs on v7x.
            # TODO(synk): if profiling shows only one TC active on v7x, switch the
            # batch axis to pltpu.CORE_PARALLEL.
            dimension_semantics=("parallel",),
            vmem_limit_bytes=vmem_limit,
            # Allow XLA to fuse the gather producers into the activation streams.
            allow_input_fusion=[True] * len(act_inputs) + [False] * len(weight_inputs),
        ),
    )(*act_inputs, *weight_inputs)

    return out.reshape(b_pad, 1)[:B]


def init_params(key, num_factors, num_users, num_items, nums_hiddens):
    """Deterministic parameter init matching the module's __init__ shapes."""
    keys = jax.random.split(key, 6 + 2 * len(nums_hiddens))
    params = {
        "P": 0.01 * jax.random.normal(keys[0], (num_users, num_factors), jnp.float32),
        "Q": 0.01 * jax.random.normal(keys[1], (num_items, num_factors), jnp.float32),
        "U": 0.01 * jax.random.normal(keys[2], (num_users, num_factors), jnp.float32),
        "V": 0.01 * jax.random.normal(keys[3], (num_items, num_factors), jnp.float32),
    }
    mlp_weights = []
    in_dim = 2 * num_factors
    ki = 4
    for h in nums_hiddens:
        scale = 1.0 / jnp.sqrt(jnp.float32(in_dim))
        W = scale * jax.random.normal(keys[ki], (in_dim, h), jnp.float32)
        b = scale * jax.random.normal(keys[ki + 1], (h,), jnp.float32)
        mlp_weights.append((W, b))
        in_dim = h
        ki += 2
    params["mlp_weights"] = mlp_weights
    pred_in = num_factors + nums_hiddens[-1]
    params["Wp"] = (1.0 / jnp.sqrt(jnp.float32(pred_in))) * jax.random.normal(
        keys[ki], (pred_in, 1), jnp.float32)
    return params


def neumf_reference(user_id, item_id, params):
    """Pure-JAX reference for correctness checking."""
    P, Q, U, V = params["P"], params["Q"], params["U"], params["V"]
    gmf = P[user_id] * Q[item_id]
    x = jnp.concatenate([U[user_id], V[item_id]], axis=1)
    for (W, b) in params["mlp_weights"]:
        x = jnp.maximum(x @ W + b, 0.0)
    con = jnp.concatenate([gmf, x], axis=1)
    return con @ params["Wp"]


if __name__ == "__main__":
    num_factors = 16
    num_users = 64
    num_items = 48
    nums_hiddens = (32, 16, 8)
    batch = 300         # not a multiple of the tile -> exercises padding
    tile_b = 128        # small tile so the demo runs a multi-step (3-tile) grid

    key = jax.random.PRNGKey(0)
    k_param, k_user, k_item = jax.random.split(key, 3)

    params = init_params(k_param, num_factors, num_users, num_items, nums_hiddens)
    user_id = jax.random.randint(k_user, (batch,), 0, num_users, dtype=jnp.int32)
    item_id = jax.random.randint(k_item, (batch,), 0, num_items, dtype=jnp.int32)

    ref = jax.block_until_ready(neumf_reference(user_id, item_id, params))

    # f32 activation streams: bit-parity path.
    out = jax.block_until_ready(
        neumf_forward(user_id, item_id, params, tile_b=tile_b, act_dtype=jnp.float32))
    assert out.shape == (batch, 1)
    assert jnp.allclose(out, ref, atol=1e-5, rtol=1e-5), (out, ref)

    # bf16 activation streams: halves gathered-activation HBM traffic (relaxed tol).
    out_bf16 = jax.block_until_ready(
        neumf_forward(user_id, item_id, params, tile_b=tile_b, act_dtype=jnp.bfloat16))
    assert out_bf16.shape == (batch, 1)
    assert jnp.allclose(out_bf16, ref, atol=2e-2), (out_bf16, ref)

    print("KERNEL_OK")
</pallas_src>

<mosaic_0001>
module attributes {stable_mosaic.version = 11 : i64} {
  func.func @kernel(%arg0: i32, %arg1: memref<128x16xf32, #tpu.memory_space<vmem>>, %arg2: memref<128x16xf32, #tpu.memory_space<vmem>>, %arg3: memref<128x16xf32, #tpu.memory_space<vmem>>, %arg4: memref<128x16xf32, #tpu.memory_space<vmem>>, %arg5: memref<16x32xf32, #tpu.memory_space<vmem>>, %arg6: memref<16x32xf32, #tpu.memory_space<vmem>>, %arg7: memref<1x32xf32, #tpu.memory_space<vmem>>, %arg8: memref<32x16xf32, #tpu.memory_space<vmem>>, %arg9: memref<1x16xf32, #tpu.memory_space<vmem>>, %arg10: memref<16x8xf32, #tpu.memory_space<vmem>>, %arg11: memref<1x8xf32, #tpu.memory_space<vmem>>, %arg12: memref<1x16xf32, #tpu.memory_space<vmem>>, %arg13: memref<1x8xf32, #tpu.memory_space<vmem>>, %arg14: memref<1x1x128xf32, #tpu.memory_space<vmem>>) attributes {dimension_semantics = [#tpu.dimension_semantics<parallel>], iteration_bounds = array<i64: 3>, scalar_prefetch = 0 : i64, scratch_operands = 0 : i64, tpu.core_type = #tpu.core_type<tc>, window_params = [{transform_indices = @transform_0, window_bounds = array<i64: 128, 16>}, {transform_indices = @transform_1, window_bounds = array<i64: 128, 16>}, {transform_indices = @transform_2, window_bounds = array<i64: 128, 16>}, {transform_indices = @transform_3, window_bounds = array<i64: 128, 16>}, {pipeline_mode = #tpu.pipeline_mode<synchronous>, transform_indices = @transform_4, window_bounds = array<i64: 16, 32>}, {pipeline_mode = #tpu.pipeline_mode<synchronous>, transform_indices = @transform_5, window_bounds = array<i64: 16, 32>}, {pipeline_mode = #tpu.pipeline_mode<synchronous>, transform_indices = @transform_6, window_bounds = array<i64: 1, 32>}, {pipeline_mode = #tpu.pipeline_mode<synchronous>, transform_indices = @transform_7, window_bounds = array<i64: 32, 16>}, {pipeline_mode = #tpu.pipeline_mode<synchronous>, transform_indices = @transform_8, window_bounds = array<i64: 1, 16>}, {pipeline_mode = #tpu.pipeline_mode<synchronous>, transform_indices = @transform_9, window_bounds = array<i64: 16, 8>}, {pipeline_mode = #tpu.pipeline_mode<synchronous>, transform_indices = @transform_10, window_bounds = array<i64: 1, 8>}, {pipeline_mode = #tpu.pipeline_mode<synchronous>, transform_indices = @transform_11, window_bounds = array<i64: 1, 16>}, {pipeline_mode = #tpu.pipeline_mode<synchronous>, transform_indices = @transform_12, window_bounds = array<i64: 1, 8>}, {transform_indices = @transform_13, window_bounds = array<i64: 1, 1, 128>}]} {
    %c0 = arith.constant 0 : index
    %c0_0 = arith.constant 0 : index
    %0 = vector.load %arg1[%c0, %c0_0] : memref<128x16xf32, #tpu.memory_space<vmem>>, vector<128x16xf32>
    %c0_1 = arith.constant 0 : index
    %c0_2 = arith.constant 0 : index
    %1 = vector.load %arg2[%c0_1, %c0_2] : memref<128x16xf32, #tpu.memory_space<vmem>>, vector<128x16xf32>
    %2 = arith.mulf %0, %1 : vector<128x16xf32>
    %c0_3 = arith.constant 0 : index
    %c0_4 = arith.constant 0 : index
    %3 = vector.load %arg3[%c0_3, %c0_4] : memref<128x16xf32, #tpu.memory_space<vmem>>, vector<128x16xf32>
    %c0_5 = arith.constant 0 : index
    %c0_6 = arith.constant 0 : index
    %4 = vector.load %arg5[%c0_5, %c0_6] : memref<16x32xf32, #tpu.memory_space<vmem>>, vector<16x32xf32>
    %cst = arith.constant dense<0.000000e+00> : vector<128x32xf32>
    %5 = tpu.matmul %3, %4, %cst {dimension_numbers = #tpu.dot_dimension_numbers<[1], [0], [0], [1], [0, 0, 1, 1], [], []>} : vector<128x16xf32>, vector<16x32xf32>, vector<128x32xf32> -> vector<128x32xf32>
    %c0_7 = arith.constant 0 : index
    %c0_8 = arith.constant 0 : index
    %6 = vector.load %arg4[%c0_7, %c0_8] : memref<128x16xf32, #tpu.memory_space<vmem>>, vector<128x16xf32>
    %c0_9 = arith.constant 0 : index
    %c0_10 = arith.constant 0 : index
    %7 = vector.load %arg6[%c0_9, %c0_10] : memref<16x32xf32, #tpu.memory_space<vmem>>, vector<16x32xf32>
    %cst_11 = arith.constant dense<0.000000e+00> : vector<128x32xf32>
    %8 = tpu.matmul %6, %7, %cst_11 {dimension_numbers = #tpu.dot_dimension_numbers<[1], [0], [0], [1], [0, 0, 1, 1], [], []>} : vector<128x16xf32>, vector<16x32xf32>, vector<128x32xf32> -> vector<128x32xf32>
    %9 = arith.addf %5, %8 : vector<128x32xf32>
    %c0_12 = arith.constant 0 : index
    %c0_13 = arith.constant 0 : index
    %10 = vector.load %arg7[%c0_12, %c0_13] : memref<1x32xf32, #tpu.memory_space<vmem>>, vector<1x32xf32>
    %11 = vector.broadcast %10 : vector<1x32xf32> to vector<128x32xf32>
    %12 = arith.addf %9, %11 : vector<128x32xf32>
    %cst_14 = arith.constant 0.000000e+00 : f32
    %13 = vector.broadcast %cst_14 : f32 to vector<128x32xf32>
    %14 = arith.maximumf %12, %13 : vector<128x32xf32>
    %c0_15 = arith.constant 0 : index
    %c0_16 = arith.constant 0 : index
    %15 = vector.load %arg8[%c0_15, %c0_16] : memref<32x16xf32, #tpu.memory_space<vmem>>, vector<32x16xf32>
    %cst_17 = arith.constant dense<0.000000e+00> : vector<128x16xf32>
    %16 = tpu.matmul %14, %15, %cst_17 {dimension_numbers = #tpu.dot_dimension_numbers<[1], [0], [0], [1], [0, 0, 1, 1], [], []>} : vector<128x32xf32>, vector<32x16xf32>, vector<128x16xf32> -> vector<128x16xf32>
    %c0_18 = arith.constant 0 : index
    %c0_19 = arith.constant 0 : index
    %17 = vector.load %arg9[%c0_18, %c0_19] : memref<1x16xf32, #tpu.memory_space<vmem>>, vector<1x16xf32>
    %18 = vector.broadcast %17 : vector<1x16xf32> to vector<128x16xf32>
    %19 = arith.addf %16, %18 : vector<128x16xf32>
    %cst_20 = arith.constant 0.000000e+00 : f32
    %20 = vector.broadcast %cst_20 : f32 to vector<128x16xf32>
    %21 = arith.maximumf %19, %20 : vector<128x16xf32>
    %c0_21 = arith.constant 0 : index
    %c0_22 = arith.constant 0 : index
    %22 = vector.load %arg10[%c0_21, %c0_22] : memref<16x8xf32, #tpu.memory_space<vmem>>, vector<16x8xf32>
    %cst_23 = arith.constant dense<0.000000e+00> : vector<128x8xf32>
    %23 = tpu.matmul %21, %22, %cst_23 {dimension_numbers = #tpu.dot_dimension_numbers<[1], [0], [0], [1], [0, 0, 1, 1], [], []>} : vector<128x16xf32>, vector<16x8xf32>, vector<128x8xf32> -> vector<128x8xf32>
    %c0_24 = arith.constant 0 : index
    %c0_25 = arith.constant 0 : index
    %24 = vector.load %arg11[%c0_24, %c0_25] : memref<1x8xf32, #tpu.memory_space<vmem>>, vector<1x8xf32>
    %25 = vector.broadcast %24 : vector<1x8xf32> to vector<128x8xf32>
    %26 = arith.addf %23, %25 : vector<128x8xf32>
    %cst_26 = arith.constant 0.000000e+00 : f32
    %27 = vector.broadcast %cst_26 : f32 to vector<128x8xf32>
    %28 = arith.maximumf %26, %27 : vector<128x8xf32>
    %c0_27 = arith.constant 0 : index
    %c0_28 = arith.constant 0 : index
    %29 = vector.load %arg12[%c0_27, %c0_28] : memref<1x16xf32, #tpu.memory_space<vmem>>, vector<1x16xf32>
    %30 = vector.broadcast %29 : vector<1x16xf32> to vector<128x16xf32>
    %31 = arith.mulf %2, %30 : vector<128x16xf32>
    %cst_29 = arith.constant dense<0.000000e+00> : vector<128xf32>
    %32 = vector.multi_reduction <add>, %31, %cst_29 [1] : vector<128x16xf32> to vector<128xf32>
    %c0_30 = arith.constant 0 : index
    %c0_31 = arith.constant 0 : index
    %33 = vector.load %arg13[%c0_30, %c0_31] : memref<1x8xf32, #tpu.memory_space<vmem>>, vector<1x8xf32>
    %34 = vector.broadcast %33 : vector<1x8xf32> to vector<128x8xf32>
    %35 = arith.mulf %28, %34 : vector<128x8xf32>
    %cst_32 = arith.constant dense<0.000000e+00> : vector<128xf32>
    %36 = vector.multi_reduction <add>, %35, %cst_32 [1] : vector<128x8xf32> to vector<128xf32>
    %37 = arith.addf %32, %36 : vector<128xf32>
    %38 = vector.shape_cast %37 : vector<128xf32> to vector<1x1x128xf32>
    %c0_33 = arith.constant 0 : index
    %c0_34 = arith.constant 0 : index
    %c0_35 = arith.constant 0 : index
    %39 = vector.load %arg14[%c0_33, %c0_34, %c0_35] : memref<1x1x128xf32, #tpu.memory_space<vmem>>, vector<1x1x128xf32>
    tpu.vector_store %arg14[%c0_33, %c0_34, %c0_35], %38 {strides = array<i32>} : memref<1x1x128xf32, #tpu.memory_space<vmem>>, vector<1x1x128xf32>,
    return
  }
  func.func @transform_0(%arg0: i32) -> (i32, i32) {
    %c0_i32 = arith.constant 0 : i32
    %c0_i32_0 = arith.constant 0 : i32
    return %arg0, %c0_i32 : i32, i32
  }
  func.func @transform_1(%arg0: i32) -> (i32, i32) {
    %c0_i32 = arith.constant 0 : i32
    %c0_i32_0 = arith.constant 0 : i32
    return %arg0, %c0_i32 : i32, i32
  }
  func.func @transform_2(%arg0: i32) -> (i32, i32) {
    %c0_i32 = arith.constant 0 : i32
    %c0_i32_0 = arith.constant 0 : i32
    return %arg0, %c0_i32 : i32, i32
  }
  func.func @transform_3(%arg0: i32) -> (i32, i32) {
    %c0_i32 = arith.constant 0 : i32
    %c0_i32_0 = arith.constant 0 : i32
    return %arg0, %c0_i32 : i32, i32
  }
  func.func @transform_4(%arg0: i32) -> (i32, i32) {
    %c0_i32 = arith.constant 0 : i32
    %c0_i32_0 = arith.constant 0 : i32
    %c0_i32_1 = arith.constant 0 : i32
    return %c0_i32, %c0_i32_0 : i32, i32
  }
  func.func @transform_5(%arg0: i32) -> (i32, i32) {
    %c0_i32 = arith.constant 0 : i32
    %c0_i32_0 = arith.constant 0 : i32
    %c0_i32_1 = arith.constant 0 : i32
    return %c0_i32, %c0_i32_0 : i32, i32
  }
  func.func @transform_6(%arg0: i32) -> (i32, i32) {
    %c0_i32 = arith.constant 0 : i32
    %c0_i32_0 = arith.constant 0 : i32
    %c0_i32_1 = arith.constant 0 : i32
    return %c0_i32, %c0_i32_0 : i32, i32
  }
  func.func @transform_7(%arg0: i32) -> (i32, i32) {
    %c0_i32 = arith.constant 0 : i32
    %c0_i32_0 = arith.constant 0 : i32
    %c0_i32_1 = arith.constant 0 : i32
    return %c0_i32, %c0_i32_0 : i32, i32
  }
  func.func @transform_8(%arg0: i32) -> (i32, i32) {
    %c0_i32 = arith.constant 0 : i32
    %c0_i32_0 = arith.constant 0 : i32
    %c0_i32_1 = arith.constant 0 : i32
    return %c0_i32, %c0_i32_0 : i32, i32
  }
  func.func @transform_9(%arg0: i32) -> (i32, i32) {
    %c0_i32 = arith.constant 0 : i32
    %c0_i32_0 = arith.constant 0 : i32
    %c0_i32_1 = arith.constant 0 : i32
    return %c0_i32, %c0_i32_0 : i32, i32
  }
  func.func @transform_10(%arg0: i32) -> (i32, i32) {
    %c0_i32 = arith.constant 0 : i32
    %c0_i32_0 = arith.constant 0 : i32
    %c0_i32_1 = arith.constant 0 : i32
    return %c0_i32, %c0_i32_0 : i32, i32
  }
  func.func @transform_11(%arg0: i32) -> (i32, i32) {
    %c0_i32 = arith.constant 0 : i32
    %c0_i32_0 = arith.constant 0 : i32
    %c0_i32_1 = arith.constant 0 : i32
    return %c0_i32, %c0_i32_0 : i32, i32
  }
  func.func @transform_12(%arg0: i32) -> (i32, i32) {
    %c0_i32 = arith.constant 0 : i32
    %c0_i32_0 = arith.constant 0 : i32
    %c0_i32_1 = arith.constant 0 : i32
    return %c0_i32, %c0_i32_0 : i32, i32
  }
  func.func @transform_13(%arg0: i32) -> (i32, i32, i32) {
    %c0_i32 = arith.constant 0 : i32
    %c0_i32_0 = arith.constant 0 : i32
    %c0_i32_1 = arith.constant 0 : i32
    return %arg0, %c0_i32, %c0_i32_0 : i32, i32, i32
  }
}

</mosaic_0001>

<llo_original>
// kernel: tpu_custom_call.1
$region0: #{tpu_custom_call.1}
  #allocation0 [shape = 'u32[]', space=smem, size = 0x4, offset = 0x4, fixed_abs, tag = 'smem constant byte address 0x4 - core index']
  #allocation1 [shape = 'u32[144,128]{1,0:T(1,128)}', space=vmem, size = 0x12000, scoped, tag = 'internal scratch']
  %s0 = inlined_call_operand.vmem [shape: f32[384,16], index: 0, kind: input, shape index: {}]
  %s1 = inlined_call_operand.vmem [shape: f32[384,16], index: 1, kind: input, shape index: {}]
  %s2 = inlined_call_operand.vmem [shape: f32[384,16], index: 2, kind: input, shape index: {}]
  %s3 = inlined_call_operand.vmem [shape: f32[384,16], index: 3, kind: input, shape index: {}]
  %s4 = inlined_call_operand.vmem [shape: f32[16,32], index: 4, kind: input, shape index: {}]
  %s5 = inlined_call_operand.vmem [shape: f32[16,32], index: 5, kind: input, shape index: {}]
  %s6 = inlined_call_operand.vmem [shape: f32[1,32], index: 6, kind: input, shape index: {}]
  %s7 = inlined_call_operand.vmem [shape: f32[32,16], index: 7, kind: input, shape index: {}]
  %s8 = inlined_call_operand.vmem [shape: f32[1,16], index: 8, kind: input, shape index: {}]
  %s9 = inlined_call_operand.vmem [shape: f32[16,8], index: 9, kind: input, shape index: {}]
  %s10 = inlined_call_operand.vmem [shape: f32[1,8], index: 10, kind: input, shape index: {}]
  %s11 = inlined_call_operand.vmem [shape: f32[1,16], index: 11, kind: input, shape index: {}]
  %s12 = inlined_call_operand.vmem [shape: f32[1,8], index: 12, kind: input, shape index: {}]
  %s13 = inlined_call_operand.hbm [shape: f32[3,1,128], index: 13, kind: output, shape index: {}]
  %s14 = sld [smem:[#allocation0]]
  $region85: #{tpu_custom_call.1} parent=0
    _
  %s16 = ssub.s32 1, %s14
  %s17 = scalar_select 0, %s16, %s14
  $region1: #{tpu_custom_call.1} parent=0
    #allocation2 [shape = 'u8[1024]{0}', space=vmem, size = 0x400, scoped, tag = 'output window, operand 0']
    #allocation3 [shape = 's32[2]{0}', space=sflag, size = 0x8, scoped, tag = 'scoped memory for tpu_custom_call.1']
    %18 = vsyncpa [#allocation3], 0
    %s19 = scalar_lea.sflag [#allocation3], 1
    %20 = vsyncpa %s19, 0
    loop: start=0, step=1, limit=5
    $region2: #{tpu_custom_call.1} parent=1 // loop_pre_header
      _
    $region3: #{tpu_custom_call.1} parent=1 // loop_header
      %s22 = sphi 0, %s26
      %p23 = scmp.ge.s32.totalorder %s22, 5
      %s32 = sphi 0, %s34
      %s35 = sphi 0, %s32
      %s36 = sphi 0, %s35
      %s52 = sphi 0, %s36
      %s58 = sphi 0, %s60
      %s61 = sphi 0, %s58
      %s62 = sphi 0, %s61
      %s78 = sphi 0, %s62
      %s84 = sphi 0, %s86
      %s87 = sphi 0, %s84
      %s88 = sphi 0, %s87
      %s104 = sphi 0, %s88
      %s110 = sphi 0, %s112
      %s113 = sphi 0, %s110
      %s114 = sphi 0, %s113
      %s130 = sphi 0, %s114
      %s134 = sphi 0, %s134
      %s136 = sphi 0, %s134
      %s137 = sphi 0, %s136
      %s151 = sphi 0, %s137
      %s155 = sphi 0, %s155
      %s157 = sphi 0, %s155
      %s158 = sphi 0, %s157
      %s172 = sphi 0, %s158
      %s176 = sphi 0, %s176
      %s178 = sphi 0, %s176
      %s179 = sphi 0, %s178
      %s193 = sphi 0, %s179
      %s197 = sphi 0, %s197
      %s199 = sphi 0, %s197
      %s200 = sphi 0, %s199
      %s214 = sphi 0, %s200
      %s218 = sphi 0, %s218
      %s220 = sphi 0, %s218
      %s221 = sphi 0, %s220
      %s235 = sphi 0, %s221
      %s239 = sphi 0, %s239
      %s241 = sphi 0, %s239
      %s242 = sphi 0, %s241
      %s256 = sphi 0, %s242
      %s260 = sphi 0, %s260
      %s262 = sphi 0, %s260
      %s263 = sphi 0, %s262
      %s277 = sphi 0, %s263
      %s281 = sphi 0, %s281
      %s283 = sphi 0, %s281
      %s284 = sphi 0, %s283
      %s298 = sphi 0, %s284
      %s302 = sphi 0, %s302
      %s304 = sphi 0, %s302
      %s305 = sphi 0, %s304
      %s319 = sphi 0, %s305
      %s325 = sphi 0, %s327
      %s328 = sphi 0, %s325
      %s329 = sphi 0, %s328
      %s345 = sphi 0, %s329
    $region4: #{tpu_custom_call.1} parent=1 // loop_header_branch
      %25 = sbr.rel (%p23) target = $region8
    $region5: #{tpu_custom_call.1} parent=1 // loop_body
      %s27 = ssub.s32 %s22, 1
      %s28 = ssub.s32 %s22, 2
      %s29 = sadd.s32 %s22, 1
      %s30 = ssub.s32 %s22, %s29
      %p31 = scmp.eq.s32.totalorder %s30, 0
      %s33 = sadd.s32 %s32, 1
      %s34 = scalar_select %p31, %s32, %s33
      %p37 = pneg %p31
      %p38 = scmp.eq.s32.totalorder %s22, 2
      %p39 = por %p37, %p38
      %p40 = scmp.ne.s32.totalorder %s32, %s35
      %p41 = scmp.eq.s32.totalorder %s22, 0
      %p42 = por %p40, %p41
      %p43 = scmp.ne.s32.totalorder %s32, %s35
      %p44 = scmp.eq.s32.totalorder %s27, 2
      %p45 = por %p43, %p44
      %p46 = scmp.ne.s32.totalorder %s35, %s36
      %p47 = scmp.eq.s32.totalorder %s27, 0
      %p48 = por %p46, %p47
      %p49 = scmp.ne.s32.totalorder %s35, %s36
      %p50 = scmp.eq.s32.totalorder %s28, 2
      %p51 = por %p49, %p50
      %p53 = scmp.ne.s32.totalorder %s36, %s52
      %p54 = scmp.eq.s32.totalorder %s28, 0
      %p55 = por %p53, %p54
      %s56 = ssub.s32 %s22, %s29
      %p57 = scmp.eq.s32.totalorder %s56, 0
      %s59 = sadd.s32 %s58, 1
      %s60 = scalar_select %p57, %s58, %s59
      %p63 = pneg %p57
      %p64 = scmp.eq.s32.totalorder %s22, 2
      %p65 = por %p63, %p64
      %p66 = scmp.ne.s32.totalorder %s58, %s61
      %p67 = scmp.eq.s32.totalorder %s22, 0
      %p68 = por %p66, %p67
      %p69 = scmp.ne.s32.totalorder %s58, %s61
      %p70 = scmp.eq.s32.totalorder %s27, 2
      %p71 = por %p69, %p70
      %p72 = scmp.ne.s32.totalorder %s61, %s62
      %p73 = scmp.eq.s32.totalorder %s27, 0
      %p74 = por %p72, %p73
      %p75 = scmp.ne.s32.totalorder %s61, %s62
      %p76 = scmp.eq.s32.totalorder %s28, 2
      %p77 = por %p75, %p76
      %p79 = scmp.ne.s32.totalorder %s62, %s78
      %p80 = scmp.eq.s32.totalorder %s28, 0
      %p81 = por %p79, %p80
      %s82 = ssub.s32 %s22, %s29
      %p83 = scmp.eq.s32.totalorder %s82, 0
      %s85 = sadd.s32 %s84, 1
      %s86 = scalar_select %p83, %s84, %s85
      %p89 = pneg %p83
      %p90 = scmp.eq.s32.totalorder %s22, 2
      %p91 = por %p89, %p90
      %p92 = scmp.ne.s32.totalorder %s84, %s87
      %p93 = scmp.eq.s32.totalorder %s22, 0
      %p94 = por %p92, %p93
      %p95 = scmp.ne.s32.totalorder %s84, %s87
      %p96 = scmp.eq.s32.totalorder %s27, 2
      %p97 = por %p95, %p96
      %p98 = scmp.ne.s32.totalorder %s87, %s88
      %p99 = scmp.eq.s32.totalorder %s27, 0
      %p100 = por %p98, %p99
      %p101 = scmp.ne.s32.totalorder %s87, %s88
      %p102 = scmp.eq.s32.totalorder %s28, 2
      %p103 = por %p101, %p102
      %p105 = scmp.ne.s32.totalorder %s88, %s104
      %p106 = scmp.eq.s32.totalorder %s28, 0
      %p107 = por %p105, %p106
      %s108 = ssub.s32 %s22, %s29
      %p109 = scmp.eq.s32.totalorder %s108, 0
      %s111 = sadd.s32 %s110, 1
      %s112 = scalar_select %p109, %s110, %s111
      %p115 = pneg %p109
      %p116 = scmp.eq.s32.totalorder %s22, 2
      %p117 = por %p115, %p116
      %p118 = scmp.ne.s32.totalorder %s110, %s113
      %p119 = scmp.eq.s32.totalorder %s22, 0
      %p120 = por %p118, %p119
      %p121 = scmp.ne.s32.totalorder %s110, %s113
      %p122 = scmp.eq.s32.totalorder %s27, 2
      %p123 = por %p121, %p122
      %p124 = scmp.ne.s32.totalorder %s113, %s114
      %p125 = scmp.eq.s32.totalorder %s27, 0
      %p126 = por %p124, %p125
      %p127 = scmp.ne.s32.totalorder %s113, %s114
      %p128 = scmp.eq.s32.totalorder %s28, 2
      %p129 = por %p127, %p128
      %p131 = scmp.ne.s32.totalorder %s114, %s130
      %p132 = scmp.eq.s32.totalorder %s28, 0
      %p133 = por %p131, %p132
      %s135 = sadd.s32 %s134, 1
      %p138 = scmp.eq.s32.totalorder %s22, 2
      %p139 = scmp.ne.s32.totalorder %s134, %s136
      %p140 = scmp.eq.s32.totalorder %s22, 0
      %p141 = por %p139, %p140
      %p142 = scmp.ne.s32.totalorder %s134, %s136
      %p143 = scmp.eq.s32.totalorder %s27, 2
      %p144 = por %p142, %p143
      %p145 = scmp.ne.s32.totalorder %s136, %s137
      %p146 = scmp.eq.s32.totalorder %s27, 0
      %p147 = por %p145, %p146
      %p148 = scmp.ne.s32.totalorder %s136, %s137
      %p149 = scmp.eq.s32.totalorder %s28, 2
      %p150 = por %p148, %p149
      %p152 = scmp.ne.s32.totalorder %s137, %s151
      %p153 = scmp.eq.s32.totalorder %s28, 0
      %p154 = por %p152, %p153
      %s156 = sadd.s32 %s155, 1
      %p159 = scmp.eq.s32.totalorder %s22, 2
      %p160 = scmp.ne.s32.totalorder %s155, %s157
      %p161 = scmp.eq.s32.totalorder %s22, 0
      %p162 = por %p160, %p161
      %p163 = scmp.ne.s32.totalorder %s155, %s157
      %p164 = scmp.eq.s32.totalorder %s27, 2
      %p165 = por %p163, %p164
      %p166 = scmp.ne.s32.totalorder %s157, %s158
      %p167 = scmp.eq.s32.totalorder %s27, 0
      %p168 = por %p166, %p167
      %p169 = scmp.ne.s32.totalorder %s157, %s158
      %p170 = scmp.eq.s32.totalorder %s28, 2
      %p171 = por %p169, %p170
      %p173 = scmp.ne.s32.totalorder %s158, %s172
      %p174 = scmp.eq.s32.totalorder %s28, 0
      %p175 = por %p173, %p174
      %s177 = sadd.s32 %s176, 1
      %p180 = scmp.eq.s32.totalorder %s22, 2
      %p181 = scmp.ne.s32.totalorder %s176, %s178
      %p182 = scmp.eq.s32.totalorder %s22, 0
      %p183 = por %p181, %p182
      %p184 = scmp.ne.s32.totalorder %s176, %s178
      %p185 = scmp.eq.s32.totalorder %s27, 2
      %p186 = por %p184, %p185
      %p187 = scmp.ne.s32.totalorder %s178, %s179
      %p188 = scmp.eq.s32.totalorder %s27, 0
      %p189 = por %p187, %p188
      %p190 = scmp.ne.s32.totalorder %s178, %s179
      %p191 = scmp.eq.s32.totalorder %s28, 2
      %p192 = por %p190, %p191
      %p194 = scmp.ne.s32.totalorder %s179, %s193
      %p195 = scmp.eq.s32.totalorder %s28, 0
      %p196 = por %p194, %p195
      %s198 = sadd.s32 %s197, 1
      %p201 = scmp.eq.s32.totalorder %s22, 2
      %p202 = scmp.ne.s32.totalorder %s197, %s199
      %p203 = scmp.eq.s32.totalorder %s22, 0
      %p204 = por %p202, %p203
      %p205 = scmp.ne.s32.totalorder %s197, %s199
      %p206 = scmp.eq.s32.totalorder %s27, 2
      %p207 = por %p205, %p206
      %p208 = scmp.ne.s32.totalorder %s199, %s200
      %p209 = scmp.eq.s32.totalorder %s27, 0
      %p210 = por %p208, %p209
      %p211 = scmp.ne.s32.totalorder %s199, %s200
      %p212 = scmp.eq.s32.totalorder %s28, 2
      %p213 = por %p211, %p212
      %p215 = scmp.ne.s32.totalorder %s200, %s214
      %p216 = scmp.eq.s32.totalorder %s28, 0
      %p217 = por %p215, %p216
      %s219 = sadd.s32 %s218, 1
      %p222 = scmp.eq.s32.totalorder %s22, 2
      %p223 = scmp.ne.s32.totalorder %s218, %s220
      %p224 = scmp.eq.s32.totalorder %s22, 0
      %p225 = por %p223, %p224
      %p226 = scmp.ne.s32.totalorder %s218, %s220
      %p227 = scmp.eq.s32.totalorder %s27, 2
      %p228 = por %p226, %p227
      %p229 = scmp.ne.s32.totalorder %s220, %s221
      %p230 = scmp.eq.s32.totalorder %s27, 0
      %p231 = por %p229, %p230
      %p232 = scmp.ne.s32.totalorder %s220, %s221
      %p233 = scmp.eq.s32.totalorder %s28, 2
      %p234 = por %p232, %p233
      %p236 = scmp.ne.s32.totalorder %s221, %s235
      %p237 = scmp.eq.s32.totalorder %s28, 0
      %p238 = por %p236, %p237
      %s240 = sadd.s32 %s239, 1
      %p243 = scmp.eq.s32.totalorder %s22, 2
      %p244 = scmp.ne.s32.totalorder %s239, %s241
      %p245 = scmp.eq.s32.totalorder %s22, 0
      %p246 = por %p244, %p245
      %p247 = scmp.ne.s32.totalorder %s239, %s241
      %p248 = scmp.eq.s32.totalorder %s27, 2
      %p249 = por %p247, %p248
      %p250 = scmp.ne.s32.totalorder %s241, %s242
      %p251 = scmp.eq.s32.totalorder %s27, 0
      %p252 = por %p250, %p251
      %p253 = scmp.ne.s32.totalorder %s241, %s242
      %p254 = scmp.eq.s32.totalorder %s28, 2
      %p255 = por %p253, %p254
      %p257 = scmp.ne.s32.totalorder %s242, %s256
      %p258 = scmp.eq.s32.totalorder %s28, 0
      %p259 = por %p257, %p258
      %s261 = sadd.s32 %s260, 1
      %p264 = scmp.eq.s32.totalorder %s22, 2
      %p265 = scmp.ne.s32.totalorder %s260, %s262
      %p266 = scmp.eq.s32.totalorder %s22, 0
      %p267 = por %p265, %p266
      %p268 = scmp.ne.s32.totalorder %s260, %s262
      %p269 = scmp.eq.s32.totalorder %s27, 2
      %p270 = por %p268, %p269
      %p271 = scmp.ne.s32.totalorder %s262, %s263
      %p272 = scmp.eq.s32.totalorder %s27, 0
      %p273 = por %p271, %p272
      %p274 = scmp.ne.s32.totalorder %s262, %s263
      %p275 = scmp.eq.s32.totalorder %s28, 2
      %p276 = por %p274, %p275
      %p278 = scmp.ne.s32.totalorder %s263, %s277
      %p279 = scmp.eq.s32.totalorder %s28, 0
      %p280 = por %p278, %p279
      %s282 = sadd.s32 %s281, 1
      %p285 = scmp.eq.s32.totalorder %s22, 2
      %p286 = scmp.ne.s32.totalorder %s281, %s283
      %p287 = scmp.eq.s32.totalorder %s22, 0
      %p288 = por %p286, %p287
      %p289 = scmp.ne.s32.totalorder %s281, %s283
      %p290 = scmp.eq.s32.totalorder %s27, 2
      %p291 = por %p289, %p290
      %p292 = scmp.ne.s32.totalorder %s283, %s284
      %p293 = scmp.eq.s32.totalorder %s27, 0
      %p294 = por %p292, %p293
      %p295 = scmp.ne.s32.totalorder %s283, %s284
      %p296 = scmp.eq.s32.totalorder %s28, 2
      %p297 = por %p295, %p296
      %p299 = scmp.ne.s32.totalorder %s284, %s298
      %p300 = scmp.eq.s32.totalorder %s28, 0
      %p301 = por %p299, %p300
      %s303 = sadd.s32 %s302, 1
      %p306 = scmp.eq.s32.totalorder %s22, 2
      %p307 = scmp.ne.s32.totalorder %s302, %s304
      %p308 = scmp.eq.s32.totalorder %s22, 0
      %p309 = por %p307, %p308
      %p310 = scmp.ne.s32.totalorder %s302, %s304
      %p311 = scmp.eq.s32.totalorder %s27, 2
      %p312 = por %p310, %p311
      %p313 = scmp.ne.s32.totalorder %s304, %s305
      %p314 = scmp.eq.s32.totalorder %s27, 0
      %p315 = por %p313, %p314
      %p316 = scmp.ne.s32.totalorder %s304, %s305
      %p317 = scmp.eq.s32.totalorder %s28, 2
      %p318 = por %p316, %p317
      %p320 = scmp.ne.s32.totalorder %s305, %s319
      %p321 = scmp.eq.s32.totalorder %s28, 0
      %p322 = por %p320, %p321
      %s323 = ssub.s32 %s22, %s29
      %p324 = scmp.eq.s32.totalorder %s323, 0
      %s326 = sadd.s32 %s325, 1
      %s327 = scalar_select %p324, %s325, %s326
      %p330 = pneg %p324
      %p331 = scmp.eq.s32.totalorder %s22, 2
      %p332 = por %p330, %p331
      %p333 = scmp.ne.s32.totalorder %s325, %s328
      %p334 = scmp.eq.s32.totalorder %s22, 0
      %p335 = por %p333, %p334
      %p336 = scmp.ne.s32.totalorder %s325, %s328
      %p337 = scmp.eq.s32.totalorder %s27, 2
      %p338 = por %p336, %p337
      %p339 = scmp.ne.s32.totalorder %s328, %s329
      %p340 = scmp.eq.s32.totalorder %s27, 0
      %p341 = por %p339, %p340
      %p342 = scmp.ne.s32.totalorder %s328, %s329
      %p343 = scmp.eq.s32.totalorder %s28, 2
      %p344 = por %p342, %p343
      %p346 = scmp.ne.s32.totalorder %s329, %s345
      %p347 = scmp.eq.s32.totalorder %s28, 0
      %p348 = por %p346, %p347
      %p349 = scmp.le.s32.totalorder 1, %s22
      %p350 = scmp.lt.s32.totalorder %s22, 4
      %p351 = pnand %p349, %p350
      %p352 = pneg %p351
      // Predicated region
      $region9: #{tpu_custom_call.1} parent=5 // pred_check
        _
      $region10: #{tpu_custom_call.1} parent=5 // pred_check_branch
        %354 = sbr.rel (%p351) target = $region12
      $region11: #{tpu_custom_call.1} parent=5 // pred_region
        %s355 = ssub.s32 %s22, 1
        // Predicated region
        $region13: #{tpu_custom_call.1} parent=11 // pred_check
          %p356 = pneg %p147
        $region14: #{tpu_custom_call.1} parent=11 // pred_check_branch
          %358 = sbr.rel (%p356) target = $region16
        $region15: #{tpu_custom_call.1} parent=11 // pred_region
          _
        $region16: #{tpu_custom_call.1} parent=11 // pred_fallthru
          _
        // Predicated region
        $region17: #{tpu_custom_call.1} parent=11 // pred_check
          %p359 = pneg %p168
        $region18: #{tpu_custom_call.1} parent=11 // pred_check_branch
          %361 = sbr.rel (%p359) target = $region20
        $region19: #{tpu_custom_call.1} parent=11 // pred_region
          _
        $region20: #{tpu_custom_call.1} parent=11 // pred_fallthru
          _
        // Predicated region
        $region21: #{tpu_custom_call.1} parent=11 // pred_check
          %p362 = pneg %p189
        $region22: #{tpu_custom_call.1} parent=11 // pred_check_branch
          %364 = sbr.rel (%p362) target = $region24
        $region23: #{tpu_custom_call.1} parent=11 // pred_region
          _
        $region24: #{tpu_custom_call.1} parent=11 // pred_fallthru
          _
        // Predicated region
        $region25: #{tpu_custom_call.1} parent=11 // pred_check
          %p365 = pneg %p210
        $region26: #{tpu_custom_call.1} parent=11 // pred_check_branch
          %367 = sbr.rel (%p365) target = $region28
        $region27: #{tpu_custom_call.1} parent=11 // pred_region
          _
        $region28: #{tpu_custom_call.1} parent=11 // pred_fallthru
          _
        // Predicated region
        $region29: #{tpu_custom_call.1} parent=11 // pred_check
          %p368 = pneg %p231
        $region30: #{tpu_custom_call.1} parent=11 // pred_check_branch
          %370 = sbr.rel (%p368) target = $region32
        $region31: #{tpu_custom_call.1} parent=11 // pred_region
          _
        $region32: #{tpu_custom_call.1} parent=11 // pred_fallthru
          _
        // Predicated region
        $region33: #{tpu_custom_call.1} parent=11 // pred_check
          %p371 = pneg %p252
        $region34: #{tpu_custom_call.1} parent=11 // pred_check_branch
          %373 = sbr.rel (%p371) target = $region36
        $region35: #{tpu_custom_call.1} parent=11 // pred_region
          _
        $region36: #{tpu_custom_call.1} parent=11 // pred_fallthru
          _
        // Predicated region
        $region37: #{tpu_custom_call.1} parent=11 // pred_check
          %p374 = pneg %p273
        $region38: #{tpu_custom_call.1} parent=11 // pred_check_branch
          %376 = sbr.rel (%p374) target = $region40
        $region39: #{tpu_custom_call.1} parent=11 // pred_region
          _
        $region40: #{tpu_custom_call.1} parent=11 // pred_fallthru
          _
        // Predicated region
        $region41: #{tpu_custom_call.1} parent=11 // pred_check
          %p377 = pneg %p294
        $region42: #{tpu_custom_call.1} parent=11 // pred_check_branch
          %379 = sbr.rel (%p377) target = $region44
        $region43: #{tpu_custom_call.1} parent=11 // pred_region
          _
        $region44: #{tpu_custom_call.1} parent=11 // pred_fallthru
          _
        // Predicated region
        $region45: #{tpu_custom_call.1} parent=11 // pred_check
          %p380 = pneg %p315
        $region46: #{tpu_custom_call.1} parent=11 // pred_check_branch
          %382 = sbr.rel (%p380) target = $region48
        $region47: #{tpu_custom_call.1} parent=11 // pred_region
          _
        $region48: #{tpu_custom_call.1} parent=11 // pred_fallthru
          _
      $region12: #{tpu_custom_call.1} parent=5 // pred_fallthru
        _
      %p383 = scmp.lt.s32.totalorder %s22, 3
      // Predicated region
      $region49: #{tpu_custom_call.1} parent=5 // pred_check
        %p384 = pneg %p383
      $region50: #{tpu_custom_call.1} parent=5 // pred_check_branch
        %386 = sbr.rel (%p384) target = $region52
      $region51: #{tpu_custom_call.1} parent=5 // pred_region
        // Predicated region
        $region53: #{tpu_custom_call.1} parent=51 // pred_check
          %p387 = pneg %p42
        $region54: #{tpu_custom_call.1} parent=51 // pred_check_branch
          %389 = sbr.rel (%p387) target = $region56
        $region55: #{tpu_custom_call.1} parent=51 // pred_region
          %s390 = smul.u32 16, %s22
          %p391 = scmp.lt.s32.totalorder %s390, 47
          %s392 = scalar_select %p391, %s390, 47
          %s393 = smul.addr %s392, 8
          %s394 = scalar_lea.vmem %s0, %s393
          %s395 = smul.u32 16, %s22
        $region56: #{tpu_custom_call.1} parent=51 // pred_fallthru
          _
        // Predicated region
        $region57: #{tpu_custom_call.1} parent=51 // pred_check
          %p396 = pneg %p68
        $region58: #{tpu_custom_call.1} parent=51 // pred_check_branch
          %398 = sbr.rel (%p396) target = $region60
        $region59: #{tpu_custom_call.1} parent=51 // pred_region
          %s399 = smul.u32 16, %s22
          %p400 = scmp.lt.s32.totalorder %s399, 47
          %s401 = scalar_select %p400, %s399, 47
          %s402 = smul.addr %s401, 8
          %s403 = scalar_lea.vmem %s1, %s402
          %s404 = smul.u32 16, %s22
        $region60: #{tpu_custom_call.1} parent=51 // pred_fallthru
          _
        // Predicated region
        $region61: #{tpu_custom_call.1} parent=51 // pred_check
          %p405 = pneg %p94
        $region62: #{tpu_custom_call.1} parent=51 // pred_check_branch
          %407 = sbr.rel (%p405) target = $region64
        $region63: #{tpu_custom_call.1} parent=51 // pred_region
          %s408 = smul.u32 16, %s22
          %p409 = scmp.lt.s32.totalorder %s408, 47
          %s410 = scalar_select %p409, %s408, 47
          %s411 = smul.addr %s410, 8
          %s412 = scalar_lea.vmem %s2, %s411
          %s413 = smul.u32 16, %s22
        $region64: #{tpu_custom_call.1} parent=51 // pred_fallthru
          _
        // Predicated region
        $region65: #{tpu_custom_call.1} parent=51 // pred_check
          %p414 = pneg %p120
        $region66: #{tpu_custom_call.1} parent=51 // pred_check_branch
          %416 = sbr.rel (%p414) target = $region68
        $region67: #{tpu_custom_call.1} parent=51 // pred_region
          %s417 = smul.u32 16, %s22
          %p418 = scmp.lt.s32.totalorder %s417, 47
          %s419 = scalar_select %p418, %s417, 47
          %s420 = smul.addr %s419, 8
          %s421 = scalar_lea.vmem %s3, %s420
          %s422 = smul.u32 16, %s22
        $region68: #{tpu_custom_call.1} parent=51 // pred_fallthru
          _
      $region52: #{tpu_custom_call.1} parent=5 // pred_fallthru
        _
      %p423 = scmp.le.s32.totalorder 1, %s22
      %p424 = scmp.lt.s32.totalorder %s22, 4
      %p425 = pnand %p423, %p424
      %p426 = pneg %p425
      // Predicated region
      $region69: #{tpu_custom_call.1} parent=5 // pred_check
        _
      $region70: #{tpu_custom_call.1} parent=5 // pred_check_branch
        %428 = sbr.rel (%p425) target = $region72
      $region71: #{tpu_custom_call.1} parent=5 // pred_region
        %s429 = ssub.s32 %s22, 1
        %s430 = smul.u32 16, %s27
        %p431 = scmp.lt.s32.totalorder %s430, 47
        %s432 = scalar_select %p431, %s430, 47
        %s433 = smul.addr %s432, 8
        %s434 = scalar_lea.vmem %s0, %s433
        %p435 = pneg %p48
        %p436 = pneg %p45
        %s437 = smul.u32 16, %s27
        %p438 = scmp.lt.s32.totalorder %s437, 47
        %s439 = scalar_select %p438, %s437, 47
        %s440 = smul.addr %s439, 8
        %s441 = scalar_lea.vmem %s1, %s440
        %p442 = pneg %p74
        %p443 = pneg %p71
        %s444 = smul.u32 16, %s27
        %p445 = scmp.lt.s32.totalorder %s444, 47
        %s446 = scalar_select %p445, %s444, 47
        %s447 = smul.addr %s446, 8
        %s448 = scalar_lea.vmem %s2, %s447
        %p449 = pneg %p100
        %p450 = pneg %p97
        %s451 = smul.u32 16, %s27
        %p452 = scmp.lt.s32.totalorder %s451, 47
        %s453 = scalar_select %p452, %s451, 47
        %s454 = smul.addr %s453, 8
        %s455 = scalar_lea.vmem %s3, %s454
        %p456 = pneg %p126
        %p457 = pneg %p123
        %p458 = pneg %p147
        %p459 = pneg %p144
        %p460 = pneg %p168
        %p461 = pneg %p165
        %p462 = pneg %p189
        %p463 = pneg %p186
        %p464 = pneg %p210
        %p465 = pneg %p207
        %p466 = pneg %p231
        %p467 = pneg %p228
        %p468 = pneg %p252
        %p469 = pneg %p249
        %p470 = pneg %p273
        %p471 = pneg %p270
        %p472 = pneg %p294
        %p473 = pneg %p291
        %p474 = pneg %p315
        %p475 = pneg %p312
        %p476 = pneg %p341
        %p477 = pneg %p338
        %s478 = sand.u32 %s328, 1
        %s479 = scalar_lea.sflag [#allocation3], %s478
        %s480 = sand.u32 %s328, 1
        %s481 = scalar_lea.vmem [#allocation2], %s480
        %s482 = smul.u32 16, %s27
        %p483 = scmp.lt.s32.totalorder %s482, 47
        %s484 = scalar_select %p483, %s482, 47
        %s485 = smul.addr %s484, 8
        %s486 = scalar_lea.vmem %s0, %s485
        %s487 = smul.u32 16, %s27
        %s488 = smul.u32 16, %s27
        %p489 = scmp.lt.s32.totalorder %s488, 47
        %s490 = scalar_select %p489, %s488, 47
        %s491 = smul.addr %s490, 8
        %s492 = scalar_lea.vmem %s1, %s491
        %s493 = smul.u32 16, %s27
        %s494 = smul.u32 16, %s27
        %p495 = scmp.lt.s32.totalorder %s494, 47
        %s496 = scalar_select %p495, %s494, 47
        %s497 = smul.addr %s496, 8
        %s498 = scalar_lea.vmem %s2, %s497
        %s499 = smul.u32 16, %s27
        %s500 = smul.u32 16, %s27
        %p501 = scmp.lt.s32.totalorder %s500, 47
        %s502 = scalar_select %p501, %s500, 47
        %s503 = smul.addr %s502, 8
        %s504 = scalar_lea.vmem %s3, %s503
        %s505 = smul.u32 16, %s27
        %v506 = vld [vmem:[%s486] sm:$0xff]
        %v507 = vld [vmem:[%s486 + $0x8] sm:$0xff]
        %v508 = vld [vmem:[%s486 + $0x10] sm:$0xff]
        %v509 = vld [vmem:[%s486 + $0x18] sm:$0xff]
        %v510 = vld [vmem:[%s486 + $0x20] sm:$0xff]
        %v511 = vld [vmem:[%s486 + $0x28] sm:$0xff]
        %v512 = vld [vmem:[%s486 + $0x30] sm:$0xff]
        %v513 = vld [vmem:[%s486 + $0x38] sm:$0xff]
        %v514 = vld [vmem:[%s486 + $0x40] sm:$0xff]
        %v515 = vld [vmem:[%s486 + $0x48] sm:$0xff]
        %v516 = vld [vmem:[%s486 + $0x50] sm:$0xff]
        %v517 = vld [vmem:[%s486 + $0x58] sm:$0xff]
        %v518 = vld [vmem:[%s486 + $0x60] sm:$0xff]
        %v519 = vld [vmem:[%s486 + $0x68] sm:$0xff]
        %v520 = vld [vmem:[%s486 + $0x70] sm:$0xff]
        %v521 = vld [vmem:[%s486 + $0x78] sm:$0xff]
        %v522 = vld [vmem:[%s492] sm:$0xff]
        %v523 = vld [vmem:[%s492 + $0x8] sm:$0xff]
        %v524 = vld [vmem:[%s492 + $0x10] sm:$0xff]
        %v525 = vld [vmem:[%s492 + $0x18] sm:$0xff]
        %v526 = vld [vmem:[%s492 + $0x20] sm:$0xff]
        %v527 = vld [vmem:[%s492 + $0x28] sm:$0xff]
        %v528 = vld [vmem:[%s492 + $0x30] sm:$0xff]
        %v529 = vld [vmem:[%s492 + $0x38] sm:$0xff]
        %v530 = vld [vmem:[%s492 + $0x40] sm:$0xff]
        %v531 = vld [vmem:[%s492 + $0x48] sm:$0xff]
        %v532 = vld [vmem:[%s492 + $0x50] sm:$0xff]
        %v533 = vld [vmem:[%s492 + $0x58] sm:$0xff]
        %v534 = vld [vmem:[%s492 + $0x60] sm:$0xff]
        %v535 = vld [vmem:[%s492 + $0x68] sm:$0xff]
        %v536 = vld [vmem:[%s492 + $0x70] sm:$0xff]
        %v537 = vld [vmem:[%s492 + $0x78] sm:$0xff]
        %v538 = vmul.f32 %v506, %v522
        %v539 = vmul.f32 %v507, %v523
        %v540 = vmul.f32 %v508, %v524
        %v541 = vmul.f32 %v509, %v525
        %v542 = vmul.f32 %v510, %v526
        %v543 = vmul.f32 %v511, %v527
        %v544 = vmul.f32 %v512, %v528
        %v545 = vmul.f32 %v513, %v529
        %v546 = vmul.f32 %v514, %v530
        %v547 = vmul.f32 %v515, %v531
        %v548 = vmul.f32 %v516, %v532
        %v549 = vmul.f32 %v517, %v533
        %v550 = vmul.f32 %v518, %v534
        %v551 = vmul.f32 %v519, %v535
        %v552 = vmul.f32 %v520, %v536
        %v553 = vmul.f32 %v521, %v537
        %v554 = vld [vmem:[%s498] sm:$0xff]
        %v555 = vld [vmem:[%s498 + $0x8] sm:$0xff]
        %v556 = vld [vmem:[%s498 + $0x10] sm:$0xff]
        %v557 = vld [vmem:[%s498 + $0x18] sm:$0xff]
        %v558 = vld [vmem:[%s498 + $0x20] sm:$0xff]
        %v559 = vld [vmem:[%s498 + $0x28] sm:$0xff]
        %v560 = vld [vmem:[%s498 + $0x30] sm:$0xff]
        %v561 = vld [vmem:[%s498 + $0x38] sm:$0xff]
        %v562 = vld [vmem:[%s498 + $0x40] sm:$0xff]
        %v563 = vld [vmem:[%s498 + $0x48] sm:$0xff]
        %v564 = vld [vmem:[%s498 + $0x50] sm:$0xff]
        %v565 = vld [vmem:[%s498 + $0x58] sm:$0xff]
        %v566 = vld [vmem:[%s498 + $0x60] sm:$0xff]
        %v567 = vld [vmem:[%s498 + $0x68] sm:$0xff]
        %v568 = vld [vmem:[%s498 + $0x70] sm:$0xff]
        %v569 = vld [vmem:[%s498 + $0x78] sm:$0xff]
        %v570 = vld [vmem:[%s4] sm:$0xff]
        %v571 = vld [vmem:[%s4 + $0x8] sm:$0xff]
        %v572 = vld [vmem:[%s504] sm:$0xff]
        %v573 = vld [vmem:[%s504 + $0x8] sm:$0xff]
        %v574 = vld [vmem:[%s504 + $0x10] sm:$0xff]
        %v575 = vld [vmem:[%s504 + $0x18] sm:$0xff]
        %v576 = vld [vmem:[%s504 + $0x20] sm:$0xff]
        %v577 = vld [vmem:[%s504 + $0x28] sm:$0xff]
        %v578 = vld [vmem:[%s504 + $0x30] sm:$0xff]
        %v579 = vld [vmem:[%s504 + $0x38] sm:$0xff]
        %v580 = vld [vmem:[%s504 + $0x40] sm:$0xff]
        %v581 = vld [vmem:[%s504 + $0x48] sm:$0xff]
        %v582 = vld [vmem:[%s504 + $0x50] sm:$0xff]
        %v583 = vld [vmem:[%s504 + $0x58] sm:$0xff]
        %v584 = vld [vmem:[%s504 + $0x60] sm:$0xff]
        %v585 = vld [vmem:[%s504 + $0x68] sm:$0xff]
        %v586 = vld [vmem:[%s504 + $0x70] sm:$0xff]
        %v587 = vld [vmem:[%s504 + $0x78] sm:$0xff]
        %v588 = vld [vmem:[%s5] sm:$0xff]
        %v589 = vld [vmem:[%s5 + $0x8] sm:$0xff]
        %vm590 = vcmask 130048
        %v592 = vsel %vm590, %v572, 0
        %v595 = vsel %vm590, %v573, 0
        %v598 = vsel %vm590, %v574, 0
        %v601 = vsel %vm590, %v575, 0
        %v604 = vsel %vm590, %v576, 0
        %v607 = vsel %vm590, %v577, 0
        %v610 = vsel %vm590, %v578, 0
        %v613 = vsel %vm590, %v579, 0
        %v616 = vsel %vm590, %v580, 0
        %v619 = vsel %vm590, %v581, 0
        %v622 = vsel %vm590, %v582, 0
        %v625 = vsel %vm590, %v583, 0
        %v628 = vsel %vm590, %v584, 0
        %v631 = vsel %vm590, %v585, 0
        %v634 = vsel %vm590, %v586, 0
        %v637 = vsel %vm590, %v587, 0
        %639 = vmatprep.subr.mxu0 0.0
        %640 = vmatpush1.msra.mxu0 0.0
        %641 = vmatprep.subr.mxu0 0.0
        %642 = vmatpush1.msra.mxu0 0.0
        %643 = vmatprep.subr.mxu0 0.0
        %644 = vmatpush1.msra.mxu0 0.0
        %645 = vmatprep.subr.mxu0 0.0
        %646 = vmatpush1.msra.mxu0 0.0
        %647 = vmatprep.subr.mxu0 0.0
        %648 = vmatpush1.msra.mxu0 0.0
        %649 = vmatprep.subr.mxu0 0.0
        %650 = vmatpush1.msra.mxu0 0.0
        %651 = vmatprep.subr.mxu0 0.0
        %652 = vmatpush1.msra.mxu0 0.0
        %653 = vmatprep.subr.mxu0 0.0
        %654 = vmatpush1.msra.mxu0 0.0
        %655 = vmatprep.subr.mxu0 0.0
        %656 = vmatpush1.msra.mxu0 0.0
        %657 = vmatprep.subr.mxu0 0.0
        %658 = vmatpush1.msra.mxu0 0.0
        %659 = vmatprep.subr.mxu0 0.0
        %660 = vmatpush1.msra.mxu0 0.0
        %661 = vmatprep.subr.mxu0 0.0
        %662 = vmatpush1.msra.mxu0 0.0
        %663 = vmatprep.subr.mxu0 0.0
        %664 = vmatpush1.msra.mxu0 0.0
        %665 = vmatprep.subr.mxu0 0.0
        %666 = vmatpush1.msra.mxu0 0.0
        %667 = vmatprep.subr.mxu0 0.0
        %668 = vmatpush1.msra.mxu0 %v589
        %669 = vmatprep.subr.mxu0 0.0
        %670 = vmatpush1.msra.mxu0 %v588
        %671 = vmatprep.subr.mxu0 0.0
        %672 = vmatpush2.msra.mxu0 0.0
        %673 = vmatprep.subr.mxu0 0.0
        %674 = vmatpush2.msra.mxu0 0.0
        %675 = vmatprep.subr.mxu0 0.0
        %676 = vmatpush2.msra.mxu0 0.0
        %677 = vmatprep.subr.mxu0 0.0
        %678 = vmatpush2.msra.mxu0 0.0
        %679 = vmatprep.subr.mxu0 0.0
        %680 = vmatpush2.msra.mxu0 0.0
        %681 = vmatprep.subr.mxu0 0.0
        %682 = vmatpush2.msra.mxu0 0.0
        %683 = vmatprep.subr.mxu0 0.0
        %684 = vmatpush2.msra.mxu0 0.0
        %685 = vmatprep.subr.mxu0 0.0
        %686 = vmatpush2.msra.mxu0 0.0
        %687 = vmatprep.subr.mxu0 0.0
        %688 = vmatpush2.msra.mxu0 0.0
        %689 = vmatprep.subr.mxu0 0.0
        %690 = vmatpush2.msra.mxu0 0.0
        %691 = vmatprep.subr.mxu0 0.0
        %692 = vmatpush2.msra.mxu0 0.0
        %693 = vmatprep.subr.mxu0 0.0
        %694 = vmatpush2.msra.mxu0 0.0
        %695 = vmatprep.subr.mxu0 0.0
        %696 = vmatpush2.msra.mxu0 0.0
        %697 = vmatprep.subr.mxu0 0.0
        %698 = vmatpush2.msra.mxu0 0.0
        %699 = vmatprep.subr.mxu0 0.0
        %700 = vmatpush2.msra.mxu0 0.0
        %701 = vmatprep.subr.mxu0 0.0
        %702 = vmatpush2.msra.mxu0 0.0
        %703 = vmatprep.mubr.f32.mxu0 0.0
        %704 = vmatmul.mubr.f32.gmra.mxu0 %v592
        %v705 = vpop.f32.mrf.mxu0
        %v706 = vadd.f32 0.0, %v705
        %v707 = vpop.f32.mrf.mxu0
        %708 = vmatprep.mubr.f32.mxu0 0.0
        %709 = vmatmul.mubr.f32.gmra.mxu0 %v595
        %v710 = vpop.f32.mrf.mxu0
        %v711 = vadd.f32 0.0, %v710
        %v712 = vpop.f32.mrf.mxu0
        %713 = vmatprep.mubr.f32.mxu0 0.0
        %714 = vmatmul.mubr.f32.gmra.mxu0 %v598
        %v715 = vpop.f32.mrf.mxu0
        %v716 = vadd.f32 0.0, %v715
        %v717 = vpop.f32.mrf.mxu0
        %718 = vmatprep.mubr.f32.mxu0 0.0
        %719 = vmatmul.mubr.f32.gmra.mxu0 %v601
        %v720 = vpop.f32.mrf.mxu0
        %v721 = vadd.f32 0.0, %v720
        %v722 = vpop.f32.mrf.mxu0
        %723 = vmatprep.mubr.f32.mxu0 0.0
        %724 = vmatmul.mubr.f32.gmra.mxu0 %v604
        %v725 = vpop.f32.mrf.mxu0
        %v726 = vadd.f32 0.0, %v725
        %v727 = vpop.f32.mrf.mxu0
        %728 = vmatprep.mubr.f32.mxu0 0.0
        %729 = vmatmul.mubr.f32.gmra.mxu0 %v607
        %v730 = vpop.f32.mrf.mxu0
        %v731 = vadd.f32 0.0, %v730
        %v732 = vpop.f32.mrf.mxu0
        %733 = vmatprep.mubr.f32.mxu0 0.0
        %734 = vmatmul.mubr.f32.gmra.mxu0 %v610
        %v735 = vpop.f32.mrf.mxu0
        %v736 = vadd.f32 0.0, %v735
        %v737 = vpop.f32.mrf.mxu0
        %738 = vmatprep.mubr.f32.mxu0 0.0
        %739 = vmatmul.mubr.f32.gmra.mxu0 %v613
        %v740 = vpop.f32.mrf.mxu0
        %v741 = vadd.f32 0.0, %v740
        %v742 = vpop.f32.mrf.mxu0
        %743 = vmatprep.mubr.f32.mxu0 0.0
        %744 = vmatmul.mubr.f32.gmra.mxu0 %v616
        %v745 = vpop.f32.mrf.mxu0
        %v746 = vadd.f32 0.0, %v745
        %v747 = vpop.f32.mrf.mxu0
        %748 = vmatprep.mubr.f32.mxu0 0.0
        %749 = vmatmul.mubr.f32.gmra.mxu0 %v619
        %v750 = vpop.f32.mrf.mxu0
        %v751 = vadd.f32 0.0, %v750
        %v752 = vpop.f32.mrf.mxu0
        %753 = vmatprep.mubr.f32.mxu0 0.0
        %754 = vmatmul.mubr.f32.gmra.mxu0 %v622
        %v755 = vpop.f32.mrf.mxu0
        %v756 = vadd.f32 0.0, %v755
        %v757 = vpop.f32.mrf.mxu0
        %758 = vmatprep.mubr.f32.mxu0 0.0
        %759 = vmatmul.mubr.f32.gmra.mxu0 %v625
        %v760 = vpop.f32.mrf.mxu0
        %v761 = vadd.f32 0.0, %v760
        %v762 = vpop.f32.mrf.mxu0
        %763 = vmatprep.mubr.f32.mxu0 0.0
        %764 = vmatmul.mubr.f32.gmra.mxu0 %v628
        %v765 = vpop.f32.mrf.mxu0
        %v766 = vadd.f32 0.0, %v765
        %v767 = vpop.f32.mrf.mxu0
        %768 = vmatprep.mubr.f32.mxu0 0.0
        %769 = vmatmul.mubr.f32.gmra.mxu0 %v631
        %v770 = vpop.f32.mrf.mxu0
        %v771 = vadd.f32 0.0, %v770
        %v772 = vpop.f32.mrf.mxu0
        %773 = vmatprep.mubr.f32.mxu0 0.0
        %774 = vmatmul.mubr.f32.gmra.mxu0 %v634
        %v775 = vpop.f32.mrf.mxu0
        %v776 = vadd.f32 0.0, %v775
        %v777 = vpop.f32.mrf.mxu0
        %778 = vmatprep.mubr.f32.mxu0 0.0
        %779 = vmatmul.mubr.f32.gmra.mxu0 %v637
        %v780 = vpop.f32.mrf.mxu0
        %v781 = vadd.f32 0.0, %v780
        %v782 = vpop.f32.mrf.mxu0
        %783 = vdwg.mxu0
        %v785 = vsel %vm590, %v554, 0
        %v788 = vsel %vm590, %v555, 0
        %v791 = vsel %vm590, %v556, 0
        %v794 = vsel %vm590, %v557, 0
        %v797 = vsel %vm590, %v558, 0
        %v800 = vsel %vm590, %v559, 0
        %v803 = vsel %vm590, %v560, 0
        %v806 = vsel %vm590, %v561, 0
        %v809 = vsel %vm590, %v562, 0
        %v812 = vsel %vm590, %v563, 0
        %v815 = vsel %vm590, %v564, 0
        %v818 = vsel %vm590, %v565, 0
        %v821 = vsel %vm590, %v566, 0
        %v824 = vsel %vm590, %v567, 0
        %v827 = vsel %vm590, %v568, 0
        %v830 = vsel %vm590, %v569, 0
        %832 = vmatprep.subr.mxu0 0.0
        %833 = vmatpush1.msra.mxu0 0.0
        %834 = vmatprep.subr.mxu0 0.0
        %835 = vmatpush1.msra.mxu0 0.0
        %836 = vmatprep.subr.mxu0 0.0
        %837 = vmatpush1.msra.mxu0 0.0
        %838 = vmatprep.subr.mxu0 0.0
        %839 = vmatpush1.msra.mxu0 0.0
        %840 = vmatprep.subr.mxu0 0.0
        %841 = vmatpush1.msra.mxu0 0.0
        %842 = vmatprep.subr.mxu0 0.0
        %843 = vmatpush1.msra.mxu0 0.0
        %844 = vmatprep.subr.mxu0 0.0
        %845 = vmatpush1.msra.mxu0 0.0
        %846 = vmatprep.subr.mxu0 0.0
        %847 = vmatpush1.msra.mxu0 0.0
        %848 = vmatprep.subr.mxu0 0.0
        %849 = vmatpush1.msra.mxu0 0.0
        %850 = vmatprep.subr.mxu0 0.0
        %851 = vmatpush1.msra.mxu0 0.0
        %852 = vmatprep.subr.mxu0 0.0
        %853 = vmatpush1.msra.mxu0 0.0
        %854 = vmatprep.subr.mxu0 0.0
        %855 = vmatpush1.msra.mxu0 0.0
        %856 = vmatprep.subr.mxu0 0.0
        %857 = vmatpush1.msra.mxu0 0.0
        %858 = vmatprep.subr.mxu0 0.0
        %859 = vmatpush1.msra.mxu0 0.0
        %860 = vmatprep.subr.mxu0 0.0
        %861 = vmatpush1.msra.mxu0 %v571
        %862 = vmatprep.subr.mxu0 0.0
        %863 = vmatpush1.msra.mxu0 %v570
        %864 = vmatprep.subr.mxu0 0.0
        %865 = vmatpush2.msra.mxu0 0.0
        %866 = vmatprep.subr.mxu0 0.0
        %867 = vmatpush2.msra.mxu0 0.0
        %868 = vmatprep.subr.mxu0 0.0
        %869 = vmatpush2.msra.mxu0 0.0
        %870 = vmatprep.subr.mxu0 0.0
        %871 = vmatpush2.msra.mxu0 0.0
        %872 = vmatprep.subr.mxu0 0.0
        %873 = vmatpush2.msra.mxu0 0.0
        %874 = vmatprep.subr.mxu0 0.0
        %875 = vmatpush2.msra.mxu0 0.0
        %876 = vmatprep.subr.mxu0 0.0
        %877 = vmatpush2.msra.mxu0 0.0
        %878 = vmatprep.subr.mxu0 0.0
        %879 = vmatpush2.msra.mxu0 0.0
        %880 = vmatprep.subr.mxu0 0.0
        %881 = vmatpush2.msra.mxu0 0.0
        %882 = vmatprep.subr.mxu0 0.0
        %883 = vmatpush2.msra.mxu0 0.0
        %884 = vmatprep.subr.mxu0 0.0
        %885 = vmatpush2.msra.mxu0 0.0
        %886 = vmatprep.subr.mxu0 0.0
        %887 = vmatpush2.msra.mxu0 0.0
        %888 = vmatprep.subr.mxu0 0.0
        %889 = vmatpush2.msra.mxu0 0.0
        %890 = vmatprep.subr.mxu0 0.0
        %891 = vmatpush2.msra.mxu0 0.0
        %892 = vmatprep.subr.mxu0 0.0
        %893 = vmatpush2.msra.mxu0 0.0
        %894 = vmatprep.subr.mxu0 0.0
        %895 = vmatpush2.msra.mxu0 0.0
        %896 = vmatprep.mubr.f32.mxu0 0.0
        %897 = vmatmul.mubr.f32.gmra.mxu0 %v785
        %v898 = vpop.f32.mrf.mxu0
        %v899 = vadd.f32 %v706, %v898
        %v900 = vpop.f32.mrf.mxu0
        %901 = vmatprep.mubr.f32.mxu0 0.0
        %902 = vmatmul.mubr.f32.gmra.mxu0 %v788
        %v903 = vpop.f32.mrf.mxu0
        %v904 = vadd.f32 %v711, %v903
        %v905 = vpop.f32.mrf.mxu0
        %906 = vmatprep.mubr.f32.mxu0 0.0
        %907 = vmatmul.mubr.f32.gmra.mxu0 %v791
        %v908 = vpop.f32.mrf.mxu0
        %v909 = vadd.f32 %v716, %v908
        %v910 = vpop.f32.mrf.mxu0
        %911 = vmatprep.mubr.f32.mxu0 0.0
        %912 = vmatmul.mubr.f32.gmra.mxu0 %v794
        %v913 = vpop.f32.mrf.mxu0
        %v914 = vadd.f32 %v721, %v913
        %v915 = vpop.f32.mrf.mxu0
        %916 = vmatprep.mubr.f32.mxu0 0.0
        %917 = vmatmul.mubr.f32.gmra.mxu0 %v797
        %v918 = vpop.f32.mrf.mxu0
        %v919 = vadd.f32 %v726, %v918
        %v920 = vpop.f32.mrf.mxu0
        %921 = vmatprep.mubr.f32.mxu0 0.0
        %922 = vmatmul.mubr.f32.gmra.mxu0 %v800
        %v923 = vpop.f32.mrf.mxu0
        %v924 = vadd.f32 %v731, %v923
        %v925 = vpop.f32.mrf.mxu0
        %926 = vmatprep.mubr.f32.mxu0 0.0
        %927 = vmatmul.mubr.f32.gmra.mxu0 %v803
        %v928 = vpop.f32.mrf.mxu0
        %v929 = vadd.f32 %v736, %v928
        %v930 = vpop.f32.mrf.mxu0
        %931 = vmatprep.mubr.f32.mxu0 0.0
        %932 = vmatmul.mubr.f32.gmra.mxu0 %v806
        %v933 = vpop.f32.mrf.mxu0
        %v934 = vadd.f32 %v741, %v933
        %v935 = vpop.f32.mrf.mxu0
        %936 = vmatprep.mubr.f32.mxu0 0.0
        %937 = vmatmul.mubr.f32.gmra.mxu0 %v809
        %v938 = vpop.f32.mrf.mxu0
        %v939 = vadd.f32 %v746, %v938
        %v940 = vpop.f32.mrf.mxu0
        %941 = vmatprep.mubr.f32.mxu0 0.0
        %942 = vmatmul.mubr.f32.gmra.mxu0 %v812
        %v943 = vpop.f32.mrf.mxu0
        %v944 = vadd.f32 %v751, %v943
        %v945 = vpop.f32.mrf.mxu0
        %946 = vmatprep.mubr.f32.mxu0 0.0
        %947 = vmatmul.mubr.f32.gmra.mxu0 %v815
        %v948 = vpop.f32.mrf.mxu0
        %v949 = vadd.f32 %v756, %v948
        %v950 = vpop.f32.mrf.mxu0
        %951 = vmatprep.mubr.f32.mxu0 0.0
        %952 = vmatmul.mubr.f32.gmra.mxu0 %v818
        %v953 = vpop.f32.mrf.mxu0
        %v954 = vadd.f32 %v761, %v953
        %v955 = vpop.f32.mrf.mxu0
        %956 = vmatprep.mubr.f32.mxu0 0.0
        %957 = vmatmul.mubr.f32.gmra.mxu0 %v821
        %v958 = vpop.f32.mrf.mxu0
        %v959 = vadd.f32 %v766, %v958
        %v960 = vpop.f32.mrf.mxu0
        %961 = vmatprep.mubr.f32.mxu0 0.0
        %962 = vmatmul.mubr.f32.gmra.mxu0 %v824
        %v963 = vpop.f32.mrf.mxu0
        %v964 = vadd.f32 %v771, %v963
        %v965 = vpop.f32.mrf.mxu0
        %966 = vmatprep.mubr.f32.mxu0 0.0
        %967 = vmatmul.mubr.f32.gmra.mxu0 %v827
        %v968 = vpop.f32.mrf.mxu0
        %v969 = vadd.f32 %v776, %v968
        %v970 = vpop.f32.mrf.mxu0
        %971 = vmatprep.mubr.f32.mxu0 0.0
        %972 = vmatmul.mubr.f32.gmra.mxu0 %v830
        %v973 = vpop.f32.mrf.mxu0
        %v974 = vadd.f32 %v781, %v973
        %v975 = vpop.f32.mrf.mxu0
        %976 = vdwg.mxu0
        %v977 = vld [vmem:[%s6] sm:$0x1]
        %v979 = vlaneseq
        %v980 = vshrl.u32 %v979, 7
        %v981 = vsub.s32 0, %v980
        %v982 = vrot.slane %v977, %v981
        %v984 = vadd.f32 %v899, %v982
        %v985 = vadd.f32 %v904, %v982
        %v986 = vadd.f32 %v909, %v982
        %v987 = vadd.f32 %v914, %v982
        %v988 = vadd.f32 %v919, %v982
        %v989 = vadd.f32 %v924, %v982
        %v990 = vadd.f32 %v929, %v982
        %v991 = vadd.f32 %v934, %v982
        %v992 = vadd.f32 %v939, %v982
        %v993 = vadd.f32 %v944, %v982
        %v994 = vadd.f32 %v949, %v982
        %v995 = vadd.f32 %v954, %v982
        %v996 = vadd.f32 %v959, %v982
        %v997 = vadd.f32 %v964, %v982
        %v998 = vadd.f32 %v969, %v982
        %v999 = vadd.f32 %v974, %v982
        %v1000 = vmax.f32 %v984, 0.0
        %v1001 = vmax.f32 %v985, 0.0
        %v1002 = vmax.f32 %v986, 0.0
        %v1003 = vmax.f32 %v987, 0.0
        %v1004 = vmax.f32 %v988, 0.0
        %v1005 = vmax.f32 %v989, 0.0
        %v1006 = vmax.f32 %v990, 0.0
        %v1007 = vmax.f32 %v991, 0.0
        %v1008 = vmax.f32 %v992, 0.0
        %v1009 = vmax.f32 %v993, 0.0
        %v1010 = vmax.f32 %v994, 0.0
        %v1011 = vmax.f32 %v995, 0.0
        %v1012 = vmax.f32 %v996, 0.0
        %v1013 = vmax.f32 %v997, 0.0
        %v1014 = vmax.f32 %v998, 0.0
        %v1015 = vmax.f32 %v999, 0.0
        %v1016 = vld [vmem:[%s7] sm:$0xff]
        %v1017 = vld [vmem:[%s7 + $0x8] sm:$0xff]
        %v1018 = vld [vmem:[%s7 + $0x10] sm:$0xff]
        %v1019 = vld [vmem:[%s7 + $0x18] sm:$0xff]
        %v1020 = vld [vmem:[%s8] sm:$0x1]
        %v1022 = vlaneseq
        %v1023 = vshrl.u32 %v1022, 7
        %v1024 = vsub.s32 0, %v1023
        %v1025 = vrot.slane %v1020, %v1024
        %vm1027 = vcmask 261120
        %v1029 = vsel %vm1027, %v1000, 0
        %v1032 = vsel %vm1027, %v1001, 0
        %v1035 = vsel %vm1027, %v1002, 0
        %v1038 = vsel %vm1027, %v1003, 0
        %v1041 = vsel %vm1027, %v1004, 0
        %v1044 = vsel %vm1027, %v1005, 0
        %v1047 = vsel %vm1027, %v1006, 0
        %v1050 = vsel %vm1027, %v1007, 0
        %v1053 = vsel %vm1027, %v1008, 0
        %v1056 = vsel %vm1027, %v1009, 0
        %v1059 = vsel %vm1027, %v1010, 0
        %v1062 = vsel %vm1027, %v1011, 0
        %v1065 = vsel %vm1027, %v1012, 0
        %v1068 = vsel %vm1027, %v1013, 0
        %v1071 = vsel %vm1027, %v1014, 0
        %v1074 = vsel %vm1027, %v1015, 0
        %1076 = vmatprep.subr.mxu0 0.0
        %1077 = vmatpush1.msra.mxu0 0.0
        %1078 = vmatprep.subr.mxu0 0.0
        %1079 = vmatpush1.msra.mxu0 0.0
        %1080 = vmatprep.subr.mxu0 0.0
        %1081 = vmatpush1.msra.mxu0 0.0
        %1082 = vmatprep.subr.mxu0 0.0
        %1083 = vmatpush1.msra.mxu0 0.0
        %1084 = vmatprep.subr.mxu0 0.0
        %1085 = vmatpush1.msra.mxu0 0.0
        %1086 = vmatprep.subr.mxu0 0.0
        %1087 = vmatpush1.msra.mxu0 0.0
        %1088 = vmatprep.subr.mxu0 0.0
        %1089 = vmatpush1.msra.mxu0 0.0
        %1090 = vmatprep.subr.mxu0 0.0
        %1091 = vmatpush1.msra.mxu0 0.0
        %1092 = vmatprep.subr.mxu0 0.0
        %1093 = vmatpush1.msra.mxu0 0.0
        %1094 = vmatprep.subr.mxu0 0.0
        %1095 = vmatpush1.msra.mxu0 0.0
        %1096 = vmatprep.subr.mxu0 0.0
        %1097 = vmatpush1.msra.mxu0 0.0
        %1098 = vmatprep.subr.mxu0 0.0
        %1099 = vmatpush1.msra.mxu0 0.0
        %1100 = vmatprep.subr.mxu0 0.0
        %1101 = vmatpush1.msra.mxu0 %v1019
        %1102 = vmatprep.subr.mxu0 0.0
        %1103 = vmatpush1.msra.mxu0 %v1018
        %1104 = vmatprep.subr.mxu0 0.0
        %1105 = vmatpush1.msra.mxu0 %v1017
        %1106 = vmatprep.subr.mxu0 0.0
        %1107 = vmatpush1.msra.mxu0 %v1016
        %1108 = vmatprep.subr.mxu0 0.0
        %1109 = vmatpush2.msra.mxu0 0.0
        %1110 = vmatprep.subr.mxu0 0.0
        %1111 = vmatpush2.msra.mxu0 0.0
        %1112 = vmatprep.subr.mxu0 0.0
        %1113 = vmatpush2.msra.mxu0 0.0
        %1114 = vmatprep.subr.mxu0 0.0
        %1115 = vmatpush2.msra.mxu0 0.0
        %1116 = vmatprep.subr.mxu0 0.0
        %1117 = vmatpush2.msra.mxu0 0.0
        %1118 = vmatprep.subr.mxu0 0.0
        %1119 = vmatpush2.msra.mxu0 0.0
        %1120 = vmatprep.subr.mxu0 0.0
        %1121 = vmatpush2.msra.mxu0 0.0
        %1122 = vmatprep.subr.mxu0 0.0
        %1123 = vmatpush2.msra.mxu0 0.0
        %1124 = vmatprep.subr.mxu0 0.0
        %1125 = vmatpush2.msra.mxu0 0.0
        %1126 = vmatprep.subr.mxu0 0.0
        %1127 = vmatpush2.msra.mxu0 0.0
        %1128 = vmatprep.subr.mxu0 0.0
        %1129 = vmatpush2.msra.mxu0 0.0
        %1130 = vmatprep.subr.mxu0 0.0
        %1131 = vmatpush2.msra.mxu0 0.0
        %1132 = vmatprep.subr.mxu0 0.0
        %1133 = vmatpush2.msra.mxu0 0.0
        %1134 = vmatprep.subr.mxu0 0.0
        %1135 = vmatpush2.msra.mxu0 0.0
        %1136 = vmatprep.subr.mxu0 0.0
        %1137 = vmatpush2.msra.mxu0 0.0
        %1138 = vmatprep.subr.mxu0 0.0
        %1139 = vmatpush2.msra.mxu0 0.0
        %1140 = vmatprep.mubr.f32.mxu0 0.0
        %1141 = vmatmul.mubr.f32.gmra.mxu0 %v1029
        %v1142 = vpop.f32.mrf.mxu0
        %v1143 = vadd.f32 %v1025, %v1142
        %v1144 = vpop.f32.mrf.mxu0
        %1145 = vmatprep.mubr.f32.mxu0 0.0
        %1146 = vmatmul.mubr.f32.gmra.mxu0 %v1032
        %v1147 = vpop.f32.mrf.mxu0
        %v1148 = vadd.f32 %v1025, %v1147
        %v1149 = vpop.f32.mrf.mxu0
        %1150 = vmatprep.mubr.f32.mxu0 0.0
        %1151 = vmatmul.mubr.f32.gmra.mxu0 %v1035
        %v1152 = vpop.f32.mrf.mxu0
        %v1153 = vadd.f32 %v1025, %v1152
        %v1154 = vpop.f32.mrf.mxu0
        %1155 = vmatprep.mubr.f32.mxu0 0.0
        %1156 = vmatmul.mubr.f32.gmra.mxu0 %v1038
        %v1157 = vpop.f32.mrf.mxu0
        %v1158 = vadd.f32 %v1025, %v1157
        %v1159 = vpop.f32.mrf.mxu0
        %1160 = vmatprep.mubr.f32.mxu0 0.0
        %1161 = vmatmul.mubr.f32.gmra.mxu0 %v1041
        %v1162 = vpop.f32.mrf.mxu0
        %v1163 = vadd.f32 %v1025, %v1162
        %v1164 = vpop.f32.mrf.mxu0
        %1165 = vmatprep.mubr.f32.mxu0 0.0
        %1166 = vmatmul.mubr.f32.gmra.mxu0 %v1044
        %v1167 = vpop.f32.mrf.mxu0
        %v1168 = vadd.f32 %v1025, %v1167
        %v1169 = vpop.f32.mrf.mxu0
        %1170 = vmatprep.mubr.f32.mxu0 0.0
        %1171 = vmatmul.mubr.f32.gmra.mxu0 %v1047
        %v1172 = vpop.f32.mrf.mxu0
        %v1173 = vadd.f32 %v1025, %v1172
        %v1174 = vpop.f32.mrf.mxu0
        %1175 = vmatprep.mubr.f32.mxu0 0.0
        %1176 = vmatmul.mubr.f32.gmra.mxu0 %v1050
        %v1177 = vpop.f32.mrf.mxu0
        %v1178 = vadd.f32 %v1025, %v1177
        %v1179 = vpop.f32.mrf.mxu0
        %1180 = vmatprep.mubr.f32.mxu0 0.0
        %1181 = vmatmul.mubr.f32.gmra.mxu0 %v1053
        %v1182 = vpop.f32.mrf.mxu0
        %v1183 = vadd.f32 %v1025, %v1182
        %v1184 = vpop.f32.mrf.mxu0
        %1185 = vmatprep.mubr.f32.mxu0 0.0
        %1186 = vmatmul.mubr.f32.gmra.mxu0 %v1056
        %v1187 = vpop.f32.mrf.mxu0
        %v1188 = vadd.f32 %v1025, %v1187
        %v1189 = vpop.f32.mrf.mxu0
        %1190 = vmatprep.mubr.f32.mxu0 0.0
        %1191 = vmatmul.mubr.f32.gmra.mxu0 %v1059
        %v1192 = vpop.f32.mrf.mxu0
        %v1193 = vadd.f32 %v1025, %v1192
        %v1194 = vpop.f32.mrf.mxu0
        %1195 = vmatprep.mubr.f32.mxu0 0.0
        %1196 = vmatmul.mubr.f32.gmra.mxu0 %v1062
        %v1197 = vpop.f32.mrf.mxu0
        %v1198 = vadd.f32 %v1025, %v1197
        %v1199 = vpop.f32.mrf.mxu0
        %1200 = vmatprep.mubr.f32.mxu0 0.0
        %1201 = vmatmul.mubr.f32.gmra.mxu0 %v1065
        %v1202 = vpop.f32.mrf.mxu0
        %v1203 = vadd.f32 %v1025, %v1202
        %v1204 = vpop.f32.mrf.mxu0
        %1205 = vmatprep.mubr.f32.mxu0 0.0
        %1206 = vmatmul.mubr.f32.gmra.mxu0 %v1068
        %v1207 = vpop.f32.mrf.mxu0
        %v1208 = vadd.f32 %v1025, %v1207
        %v1209 = vpop.f32.mrf.mxu0
        %1210 = vmatprep.mubr.f32.mxu0 0.0
        %1211 = vmatmul.mubr.f32.gmra.mxu0 %v1071
        %v1212 = vpop.f32.mrf.mxu0
        %v1213 = vadd.f32 %v1025, %v1212
        %v1214 = vpop.f32.mrf.mxu0
        %1215 = vmatprep.mubr.f32.mxu0 0.0
        %1216 = vmatmul.mubr.f32.gmra.mxu0 %v1074
        %v1217 = vpop.f32.mrf.mxu0
        %v1218 = vadd.f32 %v1025, %v1217
        %v1219 = vpop.f32.mrf.mxu0
        %1220 = vdwg.mxu0
        %v1221 = vmax.f32 %v1143, 0.0
        %v1222 = vmax.f32 %v1148, 0.0
        %v1223 = vmax.f32 %v1153, 0.0
        %v1224 = vmax.f32 %v1158, 0.0
        %v1225 = vmax.f32 %v1163, 0.0
        %v1226 = vmax.f32 %v1168, 0.0
        %v1227 = vmax.f32 %v1173, 0.0
        %v1228 = vmax.f32 %v1178, 0.0
        %v1229 = vmax.f32 %v1183, 0.0
        %v1230 = vmax.f32 %v1188, 0.0
        %v1231 = vmax.f32 %v1193, 0.0
        %v1232 = vmax.f32 %v1198, 0.0
        %v1233 = vmax.f32 %v1203, 0.0
        %v1234 = vmax.f32 %v1208, 0.0
        %v1235 = vmax.f32 %v1213, 0.0
        %v1236 = vmax.f32 %v1218, 0.0
        %v1237 = vld [vmem:[%s9] sm:$0xff]
        %v1238 = vld [vmem:[%s9 + $0x8] sm:$0xff]
        %v1239 = vld [vmem:[%s10] sm:$0x1]
        %v1241 = vlaneseq
        %v1242 = vshrl.u32 %v1241, 7
        %v1243 = vsub.s32 0, %v1242
        %v1244 = vrot.slane %v1239, %v1243
        %v1247 = vsel %vm590, %v1221, 0
        %v1250 = vsel %vm590, %v1222, 0
        %v1253 = vsel %vm590, %v1223, 0
        %v1256 = vsel %vm590, %v1224, 0
        %v1259 = vsel %vm590, %v1225, 0
        %v1262 = vsel %vm590, %v1226, 0
        %v1265 = vsel %vm590, %v1227, 0
        %v1268 = vsel %vm590, %v1228, 0
        %v1271 = vsel %vm590, %v1229, 0
        %v1274 = vsel %vm590, %v1230, 0
        %v1277 = vsel %vm590, %v1231, 0
        %v1280 = vsel %vm590, %v1232, 0
        %v1283 = vsel %vm590, %v1233, 0
        %v1286 = vsel %vm590, %v1234, 0
        %v1289 = vsel %vm590, %v1235, 0
        %v1292 = vsel %vm590, %v1236, 0
        %1294 = vmatprep.subr.mxu0 0.0
        %1295 = vmatpush1.msra.mxu0 0.0
        %1296 = vmatprep.subr.mxu0 0.0
        %1297 = vmatpush1.msra.mxu0 0.0
        %1298 = vmatprep.subr.mxu0 0.0
        %1299 = vmatpush1.msra.mxu0 0.0
        %1300 = vmatprep.subr.mxu0 0.0
        %1301 = vmatpush1.msra.mxu0 0.0
        %1302 = vmatprep.subr.mxu0 0.0
        %1303 = vmatpush1.msra.mxu0 0.0
        %1304 = vmatprep.subr.mxu0 0.0
        %1305 = vmatpush1.msra.mxu0 0.0
        %1306 = vmatprep.subr.mxu0 0.0
        %1307 = vmatpush1.msra.mxu0 0.0
        %1308 = vmatprep.subr.mxu0 0.0
        %1309 = vmatpush1.msra.mxu0 0.0
        %1310 = vmatprep.subr.mxu0 0.0
        %1311 = vmatpush1.msra.mxu0 0.0
        %1312 = vmatprep.subr.mxu0 0.0
        %1313 = vmatpush1.msra.mxu0 0.0
        %1314 = vmatprep.subr.mxu0 0.0
        %1315 = vmatpush1.msra.mxu0 0.0
        %1316 = vmatprep.subr.mxu0 0.0
        %1317 = vmatpush1.msra.mxu0 0.0
        %1318 = vmatprep.subr.mxu0 0.0
        %1319 = vmatpush1.msra.mxu0 0.0
        %1320 = vmatprep.subr.mxu0 0.0
        %1321 = vmatpush1.msra.mxu0 0.0
        %1322 = vmatprep.subr.mxu0 0.0
        %1323 = vmatpush1.msra.mxu0 %v1238
        %1324 = vmatprep.subr.mxu0 0.0
        %1325 = vmatpush1.msra.mxu0 %v1237
        %1326 = vmatprep.subr.mxu0 0.0
        %1327 = vmatpush2.msra.mxu0 0.0
        %1328 = vmatprep.subr.mxu0 0.0
        %1329 = vmatpush2.msra.mxu0 0.0
        %1330 = vmatprep.subr.mxu0 0.0
        %1331 = vmatpush2.msra.mxu0 0.0
        %1332 = vmatprep.subr.mxu0 0.0
        %1333 = vmatpush2.msra.mxu0 0.0
        %1334 = vmatprep.subr.mxu0 0.0
        %1335 = vmatpush2.msra.mxu0 0.0
        %1336 = vmatprep.subr.mxu0 0.0
        %1337 = vmatpush2.msra.mxu0 0.0
        %1338 = vmatprep.subr.mxu0 0.0
        %1339 = vmatpush2.msra.mxu0 0.0
        %1340 = vmatprep.subr.mxu0 0.0
        %1341 = vmatpush2.msra.mxu0 0.0
        %1342 = vmatprep.subr.mxu0 0.0
        %1343 = vmatpush2.msra.mxu0 0.0
        %1344 = vmatprep.subr.mxu0 0.0
        %1345 = vmatpush2.msra.mxu0 0.0
        %1346 = vmatprep.subr.mxu0 0.0
        %1347 = vmatpush2.msra.mxu0 0.0
        %1348 = vmatprep.subr.mxu0 0.0
        %1349 = vmatpush2.msra.mxu0 0.0
        %1350 = vmatprep.subr.mxu0 0.0
        %1351 = vmatpush2.msra.mxu0 0.0
        %1352 = vmatprep.subr.mxu0 0.0
        %1353 = vmatpush2.msra.mxu0 0.0
        %1354 = vmatprep.subr.mxu0 0.0
        %1355 = vmatpush2.msra.mxu0 0.0
        %1356 = vmatprep.subr.mxu0 0.0
        %1357 = vmatpush2.msra.mxu0 0.0
        %1358 = vmatprep.mubr.f32.mxu0 0.0
        %1359 = vmatmul.mubr.f32.gmra.mxu0 %v1247
        %v1360 = vpop.f32.mrf.mxu0
        %v1361 = vadd.f32 %v1244, %v1360
        %v1362 = vpop.f32.mrf.mxu0
        %1363 = vmatprep.mubr.f32.mxu0 0.0
        %1364 = vmatmul.mubr.f32.gmra.mxu0 %v1250
        %v1365 = vpop.f32.mrf.mxu0
        %v1366 = vadd.f32 %v1244, %v1365
        %v1367 = vpop.f32.mrf.mxu0
        %1368 = vmatprep.mubr.f32.mxu0 0.0
        %1369 = vmatmul.mubr.f32.gmra.mxu0 %v1253
        %v1370 = vpop.f32.mrf.mxu0
        %v1371 = vadd.f32 %v1244, %v1370
        %v1372 = vpop.f32.mrf.mxu0
        %1373 = vmatprep.mubr.f32.mxu0 0.0
        %1374 = vmatmul.mubr.f32.gmra.mxu0 %v1256
        %v1375 = vpop.f32.mrf.mxu0
        %v1376 = vadd.f32 %v1244, %v1375
        %v1377 = vpop.f32.mrf.mxu0
        %1378 = vmatprep.mubr.f32.mxu0 0.0
        %1379 = vmatmul.mubr.f32.gmra.mxu0 %v1259
        %v1380 = vpop.f32.mrf.mxu0
        %v1381 = vadd.f32 %v1244, %v1380
        %v1382 = vpop.f32.mrf.mxu0
        %1383 = vmatprep.mubr.f32.mxu0 0.0
        %1384 = vmatmul.mubr.f32.gmra.mxu0 %v1262
        %v1385 = vpop.f32.mrf.mxu0
        %v1386 = vadd.f32 %v1244, %v1385
        %v1387 = vpop.f32.mrf.mxu0
        %1388 = vmatprep.mubr.f32.mxu0 0.0
        %1389 = vmatmul.mubr.f32.gmra.mxu0 %v1265
        %v1390 = vpop.f32.mrf.mxu0
        %v1391 = vadd.f32 %v1244, %v1390
        %v1392 = vpop.f32.mrf.mxu0
        %1393 = vmatprep.mubr.f32.mxu0 0.0
        %1394 = vmatmul.mubr.f32.gmra.mxu0 %v1268
        %v1395 = vpop.f32.mrf.mxu0
        %v1396 = vadd.f32 %v1244, %v1395
        %v1397 = vpop.f32.mrf.mxu0
        %1398 = vmatprep.mubr.f32.mxu0 0.0
        %1399 = vmatmul.mubr.f32.gmra.mxu0 %v1271
        %v1400 = vpop.f32.mrf.mxu0
        %v1401 = vadd.f32 %v1244, %v1400
        %v1402 = vpop.f32.mrf.mxu0
        %1403 = vmatprep.mubr.f32.mxu0 0.0
        %1404 = vmatmul.mubr.f32.gmra.mxu0 %v1274
        %v1405 = vpop.f32.mrf.mxu0
        %v1406 = vadd.f32 %v1244, %v1405
        %v1407 = vpop.f32.mrf.mxu0
        %1408 = vmatprep.mubr.f32.mxu0 0.0
        %1409 = vmatmul.mubr.f32.gmra.mxu0 %v1277
        %v1410 = vpop.f32.mrf.mxu0
        %v1411 = vadd.f32 %v1244, %v1410
        %v1412 = vpop.f32.mrf.mxu0
        %1413 = vmatprep.mubr.f32.mxu0 0.0
        %1414 = vmatmul.mubr.f32.gmra.mxu0 %v1280
        %v1415 = vpop.f32.mrf.mxu0
        %v1416 = vadd.f32 %v1244, %v1415
        %v1417 = vpop.f32.mrf.mxu0
        %1418 = vmatprep.mubr.f32.mxu0 0.0
        %1419 = vmatmul.mubr.f32.gmra.mxu0 %v1283
        %v1420 = vpop.f32.mrf.mxu0
        %v1421 = vadd.f32 %v1244, %v1420
        %v1422 = vpop.f32.mrf.mxu0
        %1423 = vmatprep.mubr.f32.mxu0 0.0
        %1424 = vmatmul.mubr.f32.gmra.mxu0 %v1286
        %v1425 = vpop.f32.mrf.mxu0
        %v1426 = vadd.f32 %v1244, %v1425
        %v1427 = vpop.f32.mrf.mxu0
        %1428 = vmatprep.mubr.f32.mxu0 0.0
        %1429 = vmatmul.mubr.f32.gmra.mxu0 %v1289
        %v1430 = vpop.f32.mrf.mxu0
        %v1431 = vadd.f32 %v1244, %v1430
        %v1432 = vpop.f32.mrf.mxu0
        %1433 = vmatprep.mubr.f32.mxu0 0.0
        %1434 = vmatmul.mubr.f32.gmra.mxu0 %v1292
        %v1435 = vpop.f32.mrf.mxu0
        %v1436 = vadd.f32 %v1244, %v1435
        %v1437 = vpop.f32.mrf.mxu0
        %1438 = vdwg.mxu0
        %v1439 = vmax.f32 %v1361, 0.0
        %v1440 = vmax.f32 %v1366, 0.0
        %v1441 = vmax.f32 %v1371, 0.0
        %v1442 = vmax.f32 %v1376, 0.0
        %v1443 = vmax.f32 %v1381, 0.0
        %v1444 = vmax.f32 %v1386, 0.0
        %v1445 = vmax.f32 %v1391, 0.0
        %v1446 = vmax.f32 %v1396, 0.0
        %v1447 = vmax.f32 %v1401, 0.0
        %v1448 = vmax.f32 %v1406, 0.0
        %v1449 = vmax.f32 %v1411, 0.0
        %v1450 = vmax.f32 %v1416, 0.0
        %v1451 = vmax.f32 %v1421, 0.0
        %v1452 = vmax.f32 %v1426, 0.0
        %v1453 = vmax.f32 %v1431, 0.0
        %v1454 = vmax.f32 %v1436, 0.0
        %v1455 = vld [vmem:[%s11] sm:$0x1]
        %v1457 = vlaneseq
        %v1458 = vshrl.u32 %v1457, 7
        %v1459 = vsub.s32 0, %v1458
        %v1460 = vrot.slane %v1455, %v1459
        %v1462 = vmul.f32 %v538, %v1460
        %v1463 = vmul.f32 %v539, %v1460
        %v1464 = vmul.f32 %v540, %v1460
        %v1465 = vmul.f32 %v541, %v1460
        %v1466 = vmul.f32 %v542, %v1460
        %v1467 = vmul.f32 %v543, %v1460
        %v1468 = vmul.f32 %v544, %v1460
        %v1469 = vmul.f32 %v545, %v1460
        %v1470 = vmul.f32 %v546, %v1460
        %v1471 = vmul.f32 %v547, %v1460
        %v1472 = vmul.f32 %v548, %v1460
        %v1473 = vmul.f32 %v549, %v1460
        %v1474 = vmul.f32 %v550, %v1460
        %v1475 = vmul.f32 %v551, %v1460
        %v1476 = vmul.f32 %v552, %v1460
        %v1477 = vmul.f32 %v553, %v1460
        %v1478 = vsel %vm590, %v1462, 0.0
        %1479 = vadd.xlane.f32.xlu0 %v1478
        %v1480 = vpop.xlane.xlu0 %1479
        %v1481 = vsel %vm590, %v1463, 0.0
        %1482 = vadd.xlane.f32.xlu0 %v1481
        %v1483 = vpop.xlane.xlu0 %1482
        %v1484 = vsel %vm590, %v1464, 0.0
        %1485 = vadd.xlane.f32.xlu0 %v1484
        %v1486 = vpop.xlane.xlu0 %1485
        %v1487 = vsel %vm590, %v1465, 0.0
        %1488 = vadd.xlane.f32.xlu0 %v1487
        %v1489 = vpop.xlane.xlu0 %1488
        %v1490 = vsel %vm590, %v1466, 0.0
        %1491 = vadd.xlane.f32.xlu0 %v1490
        %v1492 = vpop.xlane.xlu0 %1491
        %v1493 = vsel %vm590, %v1467, 0.0
        %1494 = vadd.xlane.f32.xlu0 %v1493
        %v1495 = vpop.xlane.xlu0 %1494
        %v1496 = vsel %vm590, %v1468, 0.0
        %1497 = vadd.xlane.f32.xlu0 %v1496
        %v1498 = vpop.xlane.xlu0 %1497
        %v1499 = vsel %vm590, %v1469, 0.0
        %1500 = vadd.xlane.f32.xlu0 %v1499
        %v1501 = vpop.xlane.xlu0 %1500
        %v1502 = vsel %vm590, %v1470, 0.0
        %1503 = vadd.xlane.f32.xlu0 %v1502
        %v1504 = vpop.xlane.xlu0 %1503
        %v1505 = vsel %vm590, %v1471, 0.0
        %1506 = vadd.xlane.f32.xlu0 %v1505
        %v1507 = vpop.xlane.xlu0 %1506
        %v1508 = vsel %vm590, %v1472, 0.0
        %1509 = vadd.xlane.f32.xlu0 %v1508
        %v1510 = vpop.xlane.xlu0 %1509
        %v1511 = vsel %vm590, %v1473, 0.0
        %1512 = vadd.xlane.f32.xlu0 %v1511
        %v1513 = vpop.xlane.xlu0 %1512
        %v1514 = vsel %vm590, %v1474, 0.0
        %1515 = vadd.xlane.f32.xlu0 %v1514
        %v1516 = vpop.xlane.xlu0 %1515
        %v1517 = vsel %vm590, %v1475, 0.0
        %1518 = vadd.xlane.f32.xlu0 %v1517
        %v1519 = vpop.xlane.xlu0 %1518
        %v1520 = vsel %vm590, %v1476, 0.0
        %1521 = vadd.xlane.f32.xlu0 %v1520
        %v1522 = vpop.xlane.xlu0 %1521
        %v1523 = vsel %vm590, %v1477, 0.0
        %1524 = vadd.xlane.f32.xlu0 %v1523
        %v1525 = vpop.xlane.xlu0 %1524
        %v1526 = vld [vmem:[%s12] sm:$0x1]
        %v1528 = vlaneseq
        %v1529 = vshrl.u32 %v1528, 7
        %v1530 = vsub.s32 0, %v1529
        %v1531 = vrot.slane %v1526, %v1530
        %v1533 = vmul.f32 %v1439, %v1531
        %v1534 = vmul.f32 %v1440, %v1531
        %v1535 = vmul.f32 %v1441, %v1531
        %v1536 = vmul.f32 %v1442, %v1531
        %v1537 = vmul.f32 %v1443, %v1531
        %v1538 = vmul.f32 %v1444, %v1531
        %v1539 = vmul.f32 %v1445, %v1531
        %v1540 = vmul.f32 %v1446, %v1531
        %v1541 = vmul.f32 %v1447, %v1531
        %v1542 = vmul.f32 %v1448, %v1531
        %v1543 = vmul.f32 %v1449, %v1531
        %v1544 = vmul.f32 %v1450, %v1531
        %v1545 = vmul.f32 %v1451, %v1531
        %v1546 = vmul.f32 %v1452, %v1531
        %v1547 = vmul.f32 %v1453, %v1531
        %v1548 = vmul.f32 %v1454, %v1531
        %vm1549 = vcmask 64512
        %v1550 = vsel %vm1549, %v1533, 0.0
        %1551 = vadd.xlane.f32.xlu0 %v1550
        %v1552 = vpop.xlane.xlu0 %1551
        %v1553 = vsel %vm1549, %v1534, 0.0
        %1554 = vadd.xlane.f32.xlu0 %v1553
        %v1555 = vpop.xlane.xlu0 %1554
        %v1556 = vsel %vm1549, %v1535, 0.0
        %1557 = vadd.xlane.f32.xlu0 %v1556
        %v1558 = vpop.xlane.xlu0 %1557
        %v1559 = vsel %vm1549, %v1536, 0.0
        %1560 = vadd.xlane.f32.xlu0 %v1559
        %v1561 = vpop.xlane.xlu0 %1560
        %v1562 = vsel %vm1549, %v1537, 0.0
        %1563 = vadd.xlane.f32.xlu0 %v1562
        %v1564 = vpop.xlane.xlu0 %1563
        %v1565 = vsel %vm1549, %v1538, 0.0
        %1566 = vadd.xlane.f32.xlu0 %v1565
        %v1567 = vpop.xlane.xlu0 %1566
        %v1568 = vsel %vm1549, %v1539, 0.0
        %1569 = vadd.xlane.f32.xlu0 %v1568
        %v1570 = vpop.xlane.xlu0 %1569
        %v1571 = vsel %vm1549, %v1540, 0.0
        %1572 = vadd.xlane.f32.xlu0 %v1571
        %v1573 = vpop.xlane.xlu0 %1572
        %v1574 = vsel %vm1549, %v1541, 0.0
        %1575 = vadd.xlane.f32.xlu0 %v1574
        %v1576 = vpop.xlane.xlu0 %1575
        %v1577 = vsel %vm1549, %v1542, 0.0
        %1578 = vadd.xlane.f32.xlu0 %v1577
        %v1579 = vpop.xlane.xlu0 %1578
        %v1580 = vsel %vm1549, %v1543, 0.0
        %1581 = vadd.xlane.f32.xlu0 %v1580
        %v1582 = vpop.xlane.xlu0 %1581
        %v1583 = vsel %vm1549, %v1544, 0.0
        %1584 = vadd.xlane.f32.xlu0 %v1583
        %v1585 = vpop.xlane.xlu0 %1584
        %v1586 = vsel %vm1549, %v1545, 0.0
        %1587 = vadd.xlane.f32.xlu0 %v1586
        %v1588 = vpop.xlane.xlu0 %1587
        %v1589 = vsel %vm1549, %v1546, 0.0
        %1590 = vadd.xlane.f32.xlu0 %v1589
        %v1591 = vpop.xlane.xlu0 %1590
        %v1592 = vsel %vm1549, %v1547, 0.0
        %1593 = vadd.xlane.f32.xlu0 %v1592
        %v1594 = vpop.xlane.xlu0 %1593
        %v1595 = vsel %vm1549, %v1548, 0.0
        %1596 = vadd.xlane.f32.xlu0 %v1595
        %v1597 = vpop.xlane.xlu0 %1596
        %v1598 = vadd.f32 %v1480, %v1552
        %v1599 = vadd.f32 %v1483, %v1555
        %v1600 = vadd.f32 %v1486, %v1558
        %v1601 = vadd.f32 %v1489, %v1561
        %v1602 = vadd.f32 %v1492, %v1564
        %v1603 = vadd.f32 %v1495, %v1567
        %v1604 = vadd.f32 %v1498, %v1570
        %v1605 = vadd.f32 %v1501, %v1573
        %v1606 = vadd.f32 %v1504, %v1576
        %v1607 = vadd.f32 %v1507, %v1579
        %v1608 = vadd.f32 %v1510, %v1582
        %v1609 = vadd.f32 %v1513, %v1585
        %v1610 = vadd.f32 %v1516, %v1588
        %v1611 = vadd.f32 %v1519, %v1591
        %v1612 = vadd.f32 %v1522, %v1594
        %v1613 = vadd.f32 %v1525, %v1597
        %v1630 = vlaneseq
        %v1631 = vand.u32 %v1630, 127
        %v1632 = vlaneseq
        %v1633 = vshrl.u32 %v1632, 7
        %v1634 = vsub.s32 %v1631, %v1633
        %v1635 = vrot.slane %v1598, %v1634
        %v1636 = vadd.s32 %v1631, 4294967288
        %v1637 = vlaneseq
        %v1638 = vshrl.u32 %v1637, 7
        %v1639 = vsub.s32 %v1636, %v1638
        %v1640 = vrot.slane %v1599, %v1639
        %vm1641 = vcmask 130112
        %v1642 = vsel %vm1641, %v1640, %v1635
        %v1643 = vadd.s32 %v1631, 4294967280
        %v1644 = vlaneseq
        %v1645 = vshrl.u32 %v1644, 7
        %v1646 = vsub.s32 %v1643, %v1645
        %v1647 = vrot.slane %v1600, %v1646
        %vm1648 = vcmask 195712
        %v1649 = vsel %vm1648, %v1647, %v1642
        %v1650 = vadd.s32 %v1631, 4294967272
        %v1651 = vlaneseq
        %v1652 = vshrl.u32 %v1651, 7
        %v1653 = vsub.s32 %v1650, %v1652
        %v1654 = vrot.slane %v1601, %v1653
        %vm1655 = vcmask 261312
        %v1656 = vsel %vm1655, %v1654, %v1649
        %v1657 = vadd.s32 %v1631, 4294967264
        %v1658 = vlaneseq
        %v1659 = vshrl.u32 %v1658, 7
        %v1660 = vsub.s32 %v1657, %v1659
        %v1661 = vrot.slane %v1602, %v1660
        %vm1662 = vcmask 326912
        %v1663 = vsel %vm1662, %v1661, %v1656
        %v1664 = vadd.s32 %v1631, 4294967256
        %v1665 = vlaneseq
        %v1666 = vshrl.u32 %v1665, 7
        %v1667 = vsub.s32 %v1664, %v1666
        %v1668 = vrot.slane %v1603, %v1667
        %vm1669 = vcmask 392512
        %v1670 = vsel %vm1669, %v1668, %v1663
        %v1671 = vadd.s32 %v1631, 4294967248
        %v1672 = vlaneseq
        %v1673 = vshrl.u32 %v1672, 7
        %v1674 = vsub.s32 %v1671, %v1673
        %v1675 = vrot.slane %v1604, %v1674
        %vm1676 = vcmask 458112
        %v1677 = vsel %vm1676, %v1675, %v1670
        %v1678 = vadd.s32 %v1631, 4294967240
        %v1679 = vlaneseq
        %v1680 = vshrl.u32 %v1679, 7
        %v1681 = vsub.s32 %v1678, %v1680
        %v1682 = vrot.slane %v1605, %v1681
        %vm1683 = vcmask 523712
        %v1684 = vsel %vm1683, %v1682, %v1677
        %v1685 = vadd.s32 %v1631, 4294967232
        %v1686 = vlaneseq
        %v1687 = vshrl.u32 %v1686, 7
        %v1688 = vsub.s32 %v1685, %v1687
        %v1689 = vrot.slane %v1606, %v1688
        %vm1690 = vcmask 589312
        %v1691 = vsel %vm1690, %v1689, %v1684
        %v1692 = vadd.s32 %v1631, 4294967224
        %v1693 = vlaneseq
        %v1694 = vshrl.u32 %v1693, 7
        %v1695 = vsub.s32 %v1692, %v1694
        %v1696 = vrot.slane %v1607, %v1695
        %vm1697 = vcmask 654912
        %v1698 = vsel %vm1697, %v1696, %v1691
        %v1699 = vadd.s32 %v1631, 4294967216
        %v1700 = vlaneseq
        %v1701 = vshrl.u32 %v1700, 7
        %v1702 = vsub.s32 %v1699, %v1701
        %v1703 = vrot.slane %v1608, %v1702
        %vm1704 = vcmask 720512
        %v1705 = vsel %vm1704, %v1703, %v1698
        %v1706 = vadd.s32 %v1631, 4294967208
        %v1707 = vlaneseq
        %v1708 = vshrl.u32 %v1707, 7
        %v1709 = vsub.s32 %v1706, %v1708
        %v1710 = vrot.slane %v1609, %v1709
        %vm1711 = vcmask 786112
        %v1712 = vsel %vm1711, %v1710, %v1705
        %v1713 = vadd.s32 %v1631, 4294967200
        %v1714 = vlaneseq
        %v1715 = vshrl.u32 %v1714, 7
        %v1716 = vsub.s32 %v1713, %v1715
        %v1717 = vrot.slane %v1610, %v1716
        %vm1718 = vcmask 851712
        %v1719 = vsel %vm1718, %v1717, %v1712
        %v1720 = vadd.s32 %v1631, 4294967192
        %v1721 = vlaneseq
        %v1722 = vshrl.u32 %v1721, 7
        %v1723 = vsub.s32 %v1720, %v1722
        %v1724 = vrot.slane %v1611, %v1723
        %vm1725 = vcmask 917312
        %v1726 = vsel %vm1725, %v1724, %v1719
        %v1727 = vadd.s32 %v1631, 4294967184
        %v1728 = vlaneseq
        %v1729 = vshrl.u32 %v1728, 7
        %v1730 = vsub.s32 %v1727, %v1729
        %v1731 = vrot.slane %v1612, %v1730
        %vm1732 = vcmask 982912
        %v1733 = vsel %vm1732, %v1731, %v1726
        %v1734 = vadd.s32 %v1631, 4294967176
        %v1735 = vlaneseq
        %v1736 = vshrl.u32 %v1735, 7
        %v1737 = vsub.s32 %v1734, %v1736
        %v1738 = vrot.slane %v1613, %v1737
        %vm1739 = vcmask 1048512
        %v1740 = vsel %vm1739, %v1738, %v1733
        %1742 = vst [vmem:[%s481] sm:$0x1] %v1740
        %s1743 = sand.u32 %s328, 1
        %s1744 = scalar_lea.sflag [#allocation3], %s1743
        %s1745 = sand.u32 %s328, 1
        %s1746 = scalar_lea.vmem [#allocation2], %s1745
        // Predicated region
        $region73: #{tpu_custom_call.1} parent=71 // pred_check
          %p1747 = pneg %p338
        $region74: #{tpu_custom_call.1} parent=71 // pred_check_branch
          %1749 = sbr.rel (%p1747) target = $region76
        $region75: #{tpu_custom_call.1} parent=71 // pred_region
          %s1751 = ssub.s32 16, 16
          %1752 = vsyncadd %s1744, %s1751
          %s1753 = smul.addr %s27, 16
          %s1754 = scalar_lea.hbm %s13, %s1753
          %s1756 = sshll.u32 %s1746, 4
          %s1757 = int_to_ptr.vmem [resolvable:$true] %s1756
          %1759 = dma.vmem_to_hbm [thread:$0]  %s1757, 16, %s1754, %s1744
        $region76: #{tpu_custom_call.1} parent=71 // pred_fallthru
          _
      $region72: #{tpu_custom_call.1} parent=5 // pred_fallthru
        _
      %p1760 = scmp.le.s32.totalorder 2, %s22
      // Predicated region
      $region77: #{tpu_custom_call.1} parent=5 // pred_check
        %p1761 = pneg %p1760
      $region78: #{tpu_custom_call.1} parent=5 // pred_check_branch
        %1763 = sbr.rel (%p1761) target = $region80
      $region79: #{tpu_custom_call.1} parent=5 // pred_region
        %s1764 = ssub.s32 %s22, 2
        // Predicated region
        $region81: #{tpu_custom_call.1} parent=79 // pred_check
          %p1765 = pneg %p344
        $region82: #{tpu_custom_call.1} parent=79 // pred_check_branch
          %1767 = sbr.rel (%p1765) target = $region84
        $region83: #{tpu_custom_call.1} parent=79 // pred_region
          %s1768 = sand.u32 %s329, 1
          %s1769 = scalar_lea.sflag [#allocation3], %s1768
          %s1770 = sand.u32 %s329, 1
          %s1771 = scalar_lea.vmem [#allocation2], %s1770
          %1772 = dma.done %s1769, 16
        $region84: #{tpu_custom_call.1} parent=79 // pred_fallthru
          _
      $region80: #{tpu_custom_call.1} parent=5 // pred_fallthru
        _
    $region6: #{tpu_custom_call.1} parent=1 // loop_footer
      %s26 = sadd.s32 1, %s22
    $region7: #{tpu_custom_call.1} parent=1 // loop_footer_branch
      %21 = sbr.rel target = $region3
    $region8: #{tpu_custom_call.1} parent=1 // loop_exit
      _
    %1773 = vsyncpa [#allocation3], 1
    %s1774 = scalar_lea.sflag [#allocation3], 1
    %1775 = vsyncpa %s1774, 1

</llo_original>
